<compile_context>
chip_gen: v5e
topology: v5e:2x2
jax: 0.10.0
libtpu: 0.0.40
codegen_flags: <defaults>
</compile_context>

<pallas_src>
import jax
import jax.numpy as jnp
from jax.experimental import pallas as pl
from jax.experimental.pallas import tpu as pltpu

LANE = 128          # TPU vreg lane width: pad all matmul lane dims to this.
BATCH_TILE = 128    # batch rows processed per grid step.


def _round_up(x, m):
    return ((x + m - 1) // m) * m


def ensemble_double_fc_kernel(x_ref, wf_ref, bf_ref, w2_ref, b2_ref, out_ref):
    """One batch tile.

    x_ref  : (TN, C, H*W) f32   input images, spatial dim flattened
    wf_ref : (C,  Dp)     bf16  fused pre-ReLU weight  (Wi@W1a + Wr@W1b), lane-padded
    bf_ref : (1,  Dp)     f32   fused pre-ReLU bias    (b1), lane-padded
    w2_ref : (Dp, NCp)    bf16  last_linear weight with BN folded in, padded
    b2_ref : (1,  NCp)    f32   last_linear bias  with BN folded in, padded
    out_ref: (TN, NCp)    f32   lane-padded logits
    """
    # Global average pool over the spatial axis (backbone-trunk stand-in).
    pooled = jnp.mean(x_ref[...], axis=-1)                        # (TN, C) f32

    # cat(x0, x1) @ W1 + b1  ==  pooled @ (Wi@W1a + Wr@W1b) + b1   (pre-fused)
    h = jnp.dot(pooled.astype(jnp.bfloat16), wf_ref[...],
                preferred_element_type=jnp.float32) + bf_ref[...]

    # ReLU.
    h = jnp.maximum(h, 0.0)

    # BatchNorm1d folded into last_linear; Dropout(0.5) is identity (eval).
    out_ref[...] = (
        jnp.dot(h.astype(jnp.bfloat16), w2_ref[...],
                preferred_element_type=jnp.float32) + b2_ref[...]
    ).astype(out_ref.dtype)


def fuse_and_pad_params(params):
    """Algebraic fusion (backbone proj -> linear1, BN -> last_linear), zero
    padding of lane dims to 128, and bf16 cast of the matmul weights."""
    # Pre-ReLU affine fusion (valid because the stand-in backbones are linear).
    w_fused = params["wi"] @ params["w1a"] + params["wr"] @ params["w1b"]     # (C, D)
    b_fused = params["bi"] @ params["w1a"] + params["br"] @ params["w1b"] + params["b1"]

    # Fold inference-mode BatchNorm1d into last_linear.
    w2_folded = params["bn_scale"].reshape(-1, 1) * params["w2"]              # (D, NC)
    b2_folded = params["bn_shift"] @ params["w2"] + params["b2"]              # (1, NC)

    d = w_fused.shape[1]
    nc = w2_folded.shape[1]
    d_pad = _round_up(d, LANE)
    nc_pad = _round_up(nc, LANE)

    w_fused = jnp.pad(w_fused, ((0, 0), (0, d_pad - d)))
    b_fused = jnp.pad(b_fused, ((0, 0), (0, d_pad - d)))
    w2_folded = jnp.pad(w2_folded, ((0, d_pad - d), (0, nc_pad - nc)))
    b2_folded = jnp.pad(b2_folded, ((0, 0), (0, nc_pad - nc)))

    return dict(
        w_fused=w_fused.astype(jnp.bfloat16),
        b_fused=b_fused.astype(jnp.float32),
        w2=w2_folded.astype(jnp.bfloat16),
        b2=b2_folded.astype(jnp.float32),
        num_classes=nc,
    )


def ensemble_double_fc_forward(x, fused, *, batch_tile=BATCH_TILE):
    """x: (N, C, H, W) float32. Returns logits (N, num_classes) float32."""
    n, c, h, w = x.shape
    hw = h * w
    d_pad = fused["w_fused"].shape[1]
    nc_pad = fused["w2"].shape[1]
    num_classes = fused["num_classes"]

    # Pad batch to a multiple of the tile so MXU matmuls see sublane-dense rows.
    n_pad = pl.cdiv(n, batch_tile) * batch_tile
    x3 = x.reshape(n, c, hw)
    if n_pad != n:
        x3 = jnp.pad(x3, ((0, n_pad - n), (0, 0), (0, 0)))

    grid = (n_pad // batch_tile,)

    out = pl.pallas_call(
        ensemble_double_fc_kernel,
        out_shape=jax.ShapeDtypeStruct((n_pad, nc_pad), jnp.float32),
        grid_spec=pltpu.PrefetchScalarGridSpec(
            num_scalar_prefetch=0,
            grid=grid,
            in_specs=[
                # activations: tiled over the batch (software-pipelined DMA)
                pl.BlockSpec((batch_tile, c, hw), lambda i: (i, 0, 0)),
                # weights/biases: same block every step -> stay VMEM-resident
                pl.BlockSpec((c, d_pad), lambda i: (0, 0)),
                pl.BlockSpec((1, d_pad), lambda i: (0, 0)),
                pl.BlockSpec((d_pad, nc_pad), lambda i: (0, 0)),
                pl.BlockSpec((1, nc_pad), lambda i: (0, 0)),
            ],
            out_specs=pl.BlockSpec((batch_tile, nc_pad), lambda i: (i, 0)),
        ),
        compiler_params=pltpu.CompilerParams(
            dimension_semantics=("parallel",),   # batch shards over v7x's 2 TCs
            vmem_limit_bytes=48 * 1024 * 1024,   # budget against v7x's 64 MiB VMEM
        ),
    )(x3, fused["w_fused"], fused["b_fused"], fused["w2"], fused["b2"])

    # Strip batch padding and the lane padding of the class dim.
    return out[:n, :num_classes]


def make_params(key, c, f0, f1, d, num_classes, eps=1e-5):
    """Deterministic truncated-normal init matching the module's __init__:
    stddev 0.1 for Linear weights, 0.001 for last_linear, BN gamma=1 beta=0."""
    ks = jax.random.split(key, 10)

    def tn(k, shape, std):
        return jax.random.truncated_normal(k, -2.0, 2.0, shape, jnp.float32) * std

    wi = tn(ks[0], (c, f0), 0.1)
    bi = jnp.zeros((1, f0), jnp.float32)
    wr = tn(ks[1], (c, f1), 0.1)
    br = jnp.zeros((1, f1), jnp.float32)

    w1 = tn(ks[2], (f0 + f1, d), 0.1)        # linear1 weight (in, out)
    b1 = tn(ks[3], (1, d), 0.1)
    w1a, w1b = w1[:f0, :], w1[f0:, :]

    w2 = tn(ks[4], (d, num_classes), 0.001)  # last_linear, stddev=0.001
    b2 = tn(ks[5], (1, num_classes), 0.001)

    # BatchNorm1d: gamma=1, beta=0, running_mean=0, running_var=1 (inference)
    gamma = jnp.ones((1, d), jnp.float32)
    beta = jnp.zeros((1, d), jnp.float32)
    run_mean = jnp.zeros((1, d), jnp.float32)
    run_var = jnp.ones((1, d), jnp.float32)
    bn_scale = gamma / jnp.sqrt(run_var + eps)
    bn_shift = beta - run_mean * bn_scale

    return dict(wi=wi, bi=bi, wr=wr, br=br, w1a=w1a, w1b=w1b, b1=b1,
                bn_scale=bn_scale, bn_shift=bn_shift, w2=w2, b2=b2)


def reference_forward(x, params):
    """Pure-JAX f32 reference mirroring the PyTorch forward (inference mode),
    unfused and unpadded. Note: PyTorch's .squeeze() would drop the batch dim
    when N==1; here we intentionally keep (N, NUM_CLASSES)."""
    pooled = jnp.mean(x, axis=(2, 3))
    x0 = pooled @ params["wi"] + params["bi"]          # (N, F0)  (~ (N,F0,1,1))
    x1 = pooled @ params["wr"] + params["br"]          # (N, F1)
    x0x1 = jnp.concatenate([x0, x1], axis=1)           # cat dim 1, then squeeze
    h = x0x1 @ jnp.concatenate([params["w1a"], params["w1b"]], axis=0) + params["b1"]
    h = jnp.maximum(h, 0.0)
    h = h * params["bn_scale"] + params["bn_shift"]
    return h @ params["w2"] + params["b2"]


if __name__ == "__main__":
    N, C, H, W = 2, 4, 16, 16          # input image, NCHW
    F0, F1 = 32, 32                    # backbone last_linear.in_features
    D = F0 + F1                        # intermediate_dim (default in __init__)
    NUM_CLASSES = 10

    key = jax.random.PRNGKey(0)
    kx, kp = jax.random.split(key)
    x = jax.random.normal(kx, (N, C, H, W), dtype=jnp.float32)
    params = make_params(kp, C, F0, F1, D, NUM_CLASSES)
    fused = fuse_and_pad_params(params)

    out = ensemble_double_fc_forward(x, fused)
    out = jax.block_until_ready(out)

    ref = reference_forward(x, params)
    assert out.shape == (N, NUM_CLASSES)
    # bf16 matmul weights vs. f32 reference: tolerance loosened accordingly.
    max_err = float(jnp.max(jnp.abs(out - ref)))
    assert jnp.allclose(out, ref, atol=1e-4, rtol=1e-2), max_err

    print("KERNEL_OK")
</pallas_src>

<mosaic_0001>
module attributes {stable_mosaic.version = 11 : i64} {
  func.func @ensemble_double_fc_kernel(%arg0: i32, %arg1: memref<128x4x256xf32, #tpu.memory_space<vmem>>, %arg2: memref<4x128xbf16, #tpu.memory_space<vmem>>, %arg3: memref<1x128xf32, #tpu.memory_space<vmem>>, %arg4: memref<128x128xbf16, #tpu.memory_space<vmem>>, %arg5: memref<1x128xf32, #tpu.memory_space<vmem>>, %arg6: memref<128x128xf32, #tpu.memory_space<vmem>>) attributes {dimension_semantics = [#tpu.dimension_semantics<parallel>], iteration_bounds = array<i64: 1>, scalar_prefetch = 0 : i64, scratch_operands = 0 : i64, tpu.core_type = #tpu.core_type<tc>, window_params = [{transform_indices = @transform_0, window_bounds = array<i64: 128, 4, 256>}, {pipeline_mode = #tpu.pipeline_mode<synchronous>, transform_indices = @transform_1, window_bounds = array<i64: 4, 128>}, {pipeline_mode = #tpu.pipeline_mode<synchronous>, transform_indices = @transform_2, window_bounds = array<i64: 1, 128>}, {pipeline_mode = #tpu.pipeline_mode<synchronous>, transform_indices = @transform_3, window_bounds = array<i64: 128, 128>}, {pipeline_mode = #tpu.pipeline_mode<synchronous>, transform_indices = @transform_4, window_bounds = array<i64: 1, 128>}, {transform_indices = @transform_5, window_bounds = array<i64: 128, 128>}]} {
    %c0 = arith.constant 0 : index
    %c0_0 = arith.constant 0 : index
    %c0_1 = arith.constant 0 : index
    %0 = vector.load %arg1[%c0, %c0_0, %c0_1] : memref<128x4x256xf32, #tpu.memory_space<vmem>>, vector<128x4x256xf32>
    %cst = arith.constant dense<0.000000e+00> : vector<128x4xf32>
    %1 = vector.multi_reduction <add>, %0, %cst [2] : vector<128x4x256xf32> to vector<128x4xf32>
    %cst_2 = arith.constant 2.560000e+02 : f32
    %2 = vector.broadcast %cst_2 : f32 to vector<128x4xf32>
    %3 = arith.divf %1, %2 : vector<128x4xf32>
    %4 = arith.truncf %3 : vector<128x4xf32> to vector<128x4xbf16>
    %c0_3 = arith.constant 0 : index
    %c0_4 = arith.constant 0 : index
    %5 = vector.load %arg2[%c0_3, %c0_4] : memref<4x128xbf16, #tpu.memory_space<vmem>>, vector<4x128xbf16>
    %cst_5 = arith.constant dense<0.000000e+00> : vector<128x128xf32>
    %6 = tpu.matmul %4, %5, %cst_5 {dimension_numbers = #tpu.dot_dimension_numbers<[1], [0], [0], [1], [0, 0, 1, 1], [], []>} : vector<128x4xbf16>, vector<4x128xbf16>, vector<128x128xf32> -> vector<128x128xf32>
    %c0_6 = arith.constant 0 : index
    %c0_7 = arith.constant 0 : index
    %7 = vector.load %arg3[%c0_6, %c0_7] : memref<1x128xf32, #tpu.memory_space<vmem>>, vector<1x128xf32>
    %8 = vector.broadcast %7 : vector<1x128xf32> to vector<128x128xf32>
    %9 = arith.addf %6, %8 : vector<128x128xf32>
    %cst_8 = arith.constant 0.000000e+00 : f32
    %10 = vector.broadcast %cst_8 : f32 to vector<128x128xf32>
    %11 = arith.maximumf %9, %10 : vector<128x128xf32>
    %12 = arith.truncf %11 : vector<128x128xf32> to vector<128x128xbf16>
    %c0_9 = arith.constant 0 : index
    %c0_10 = arith.constant 0 : index
    %13 = vector.load %arg4[%c0_9, %c0_10] : memref<128x128xbf16, #tpu.memory_space<vmem>>, vector<128x128xbf16>
    %cst_11 = arith.constant dense<0.000000e+00> : vector<128x128xf32>
    %14 = tpu.matmul %12, %13, %cst_11 {dimension_numbers = #tpu.dot_dimension_numbers<[1], [0], [0], [1], [0, 0, 1, 1], [], []>} : vector<128x128xbf16>, vector<128x128xbf16>, vector<128x128xf32> -> vector<128x128xf32>
    %c0_12 = arith.constant 0 : index
    %c0_13 = arith.constant 0 : index
    %15 = vector.load %arg5[%c0_12, %c0_13] : memref<1x128xf32, #tpu.memory_space<vmem>>, vector<1x128xf32>
    %16 = vector.broadcast %15 : vector<1x128xf32> to vector<128x128xf32>
    %17 = arith.addf %14, %16 : vector<128x128xf32>
    %c0_14 = arith.constant 0 : index
    %c0_15 = arith.constant 0 : index
    %18 = vector.load %arg6[%c0_14, %c0_15] : memref<128x128xf32, #tpu.memory_space<vmem>>, vector<128x128xf32>
    tpu.vector_store %arg6[%c0_14, %c0_15], %17 {strides = array<i32>} : memref<128x128xf32, #tpu.memory_space<vmem>>, vector<128x128xf32>,
    return
  }
  func.func @transform_0(%arg0: i32) -> (i32, i32, i32) {
    %c0_i32 = arith.constant 0 : i32
    %c0_i32_0 = arith.constant 0 : i32
    %c0_i32_1 = arith.constant 0 : i32
    return %arg0, %c0_i32, %c0_i32_0 : i32, i32, i32
  }
  func.func @transform_1(%arg0: i32) -> (i32, i32) {
    %c0_i32 = arith.constant 0 : i32
    %c0_i32_0 = arith.constant 0 : i32
    %c0_i32_1 = arith.constant 0 : i32
    return %c0_i32, %c0_i32_0 : i32, i32
  }
  func.func @transform_2(%arg0: i32) -> (i32, i32) {
    %c0_i32 = arith.constant 0 : i32
    %c0_i32_0 = arith.constant 0 : i32
    %c0_i32_1 = arith.constant 0 : i32
    return %c0_i32, %c0_i32_0 : i32, i32
  }
  func.func @transform_3(%arg0: i32) -> (i32, i32) {
    %c0_i32 = arith.constant 0 : i32
    %c0_i32_0 = arith.constant 0 : i32
    %c0_i32_1 = arith.constant 0 : i32
    return %c0_i32, %c0_i32_0 : i32, i32
  }
  func.func @transform_4(%arg0: i32) -> (i32, i32) {
    %c0_i32 = arith.constant 0 : i32
    %c0_i32_0 = arith.constant 0 : i32
    %c0_i32_1 = arith.constant 0 : i32
    return %c0_i32, %c0_i32_0 : i32, i32
  }
  func.func @transform_5(%arg0: i32) -> (i32, i32) {
    %c0_i32 = arith.constant 0 : i32
    %c0_i32_0 = arith.constant 0 : i32
    return %arg0, %c0_i32 : i32, i32
  }
}

</mosaic_0001>

<llo_original>
// kernel: tpu_custom_call.1
$region0: #{tpu_custom_call.1}
  #allocation0 [shape = 'u32[]', space=smem, size = 0x4, offset = 0x4, fixed_abs, tag = 'smem constant byte address 0x4 - core index']
  #allocation1 [shape = 'u32[72,128]{1,0:T(1,128)}', space=vmem, size = 0x9000, scoped, tag = 'internal scratch']
  %s0 = inlined_call_operand.hbm [shape: f32[128,4,256], index: 0, kind: input, shape index: {}]
  %s1 = inlined_call_operand.hbm [shape: bf16[4,128], index: 1, kind: input, shape index: {}]
  %s2 = inlined_call_operand.vmem [shape: f32[1,128], index: 2, kind: input, shape index: {}]
  %s3 = inlined_call_operand.hbm [shape: bf16[128,128], index: 3, kind: input, shape index: {}]
  %s4 = inlined_call_operand.vmem [shape: f32[1,128], index: 4, kind: input, shape index: {}]
  %s5 = inlined_call_operand.hbm [shape: f32[128,128], index: 5, kind: output, shape index: {}]
  %s6 = sld [smem:[#allocation0]]
  $region42: #{tpu_custom_call.1} parent=0
    _
  %s8 = ssub.s32 1, %s6
  %s9 = scalar_select 0, %s8, %s6
  $region1: #{tpu_custom_call.1} parent=0
    #allocation2 [shape = 'u8[524288]{0}', space=vmem, size = 0x80000, scoped, tag = 'input window, operand 0, single buffered']
    #allocation3 [shape = 's32[1]{0}', space=sflag, size = 0x4, scoped, tag = 'scoped memory for tpu_custom_call.1']
    #allocation4 [shape = 's32[1]{0}', space=sflag, size = 0x4, scoped, tag = 'scoped memory for tpu_custom_call.1']
    #allocation5 [shape = 'u8[1024]{0}', space=vmem, size = 0x400, scoped, tag = 'input window, operand 1, single buffered']
    #allocation6 [shape = 's32[1]{0}', space=sflag, size = 0x4, scoped, tag = 'scoped memory for tpu_custom_call.1']
    #allocation7 [shape = 'u8[32768]{0}', space=vmem, size = 0x8000, scoped, tag = 'input window, operand 3, single buffered']
    #allocation8 [shape = 'u8[65536]{0}', space=vmem, size = 0x10000, scoped, tag = 'output window, operand 0, single buffered']
    %10 = vsyncpa [#allocation3], 0
    %11 = vsyncpa [#allocation6], 0
    %12 = vsyncpa [#allocation4], 0
    // Predicated region
    $region2: #{tpu_custom_call.1} parent=1 // pred_check
      _
    $region3: #{tpu_custom_call.1} parent=1 // pred_check_branch
      %14 = sbr.rel (0) target = $region5
    $region4: #{tpu_custom_call.1} parent=1 // pred_region
      %16 = vsyncadd [#allocation3], 0
      %s17 = sshll.u32 %s0, 4
      %s18 = int_to_ptr.hbm [resolvable:$true] %s17
      %s19 = sshll.u32 [#allocation2], 4
      %s20 = int_to_ptr.vmem [resolvable:$true] %s19
      %25 = dma.hbm_to_vmem [thread:$0]  %s18, 16384, %s20, [#allocation3], 128, 128, 8
    $region5: #{tpu_custom_call.1} parent=1 // pred_fallthru
      _
    // Predicated region
    $region6: #{tpu_custom_call.1} parent=1 // pred_check
      _
    $region7: #{tpu_custom_call.1} parent=1 // pred_check_branch
      %27 = sbr.rel (0) target = $region9
    $region8: #{tpu_custom_call.1} parent=1 // pred_region
      %29 = vsyncadd [#allocation6], 0
      %s31 = sshll.u32 %s1, 4
      %s32 = int_to_ptr.hbm [resolvable:$true] %s31
      %s33 = sshll.u32 [#allocation5], 4
      %s34 = int_to_ptr.vmem [resolvable:$true] %s33
      %36 = dma.hbm_to_vmem [thread:$0]  %s32, 32, %s34, [#allocation6]
    $region9: #{tpu_custom_call.1} parent=1 // pred_fallthru
      _
    // Predicated region
    $region10: #{tpu_custom_call.1} parent=1 // pred_check
      _
    $region11: #{tpu_custom_call.1} parent=1 // pred_check_branch
      %38 = sbr.rel (0) target = $region13
    $region12: #{tpu_custom_call.1} parent=1 // pred_region
      _
    $region13: #{tpu_custom_call.1} parent=1 // pred_fallthru
      _
    // Predicated region
    $region14: #{tpu_custom_call.1} parent=1 // pred_check
      _
    $region15: #{tpu_custom_call.1} parent=1 // pred_check_branch
      %40 = sbr.rel (0) target = $region17
    $region16: #{tpu_custom_call.1} parent=1 // pred_region
      %42 = vsyncadd [#allocation6], 0
      %s43 = sshll.u32 %s3, 4
      %s44 = int_to_ptr.hbm [resolvable:$true] %s43
      %s45 = sshll.u32 [#allocation7], 4
      %s46 = int_to_ptr.vmem [resolvable:$true] %s45
      %51 = dma.hbm_to_vmem [thread:$0]  %s44, 1024, %s46, [#allocation6], 64, 64, 4
    $region17: #{tpu_custom_call.1} parent=1 // pred_fallthru
      _
    // Predicated region
    $region18: #{tpu_custom_call.1} parent=1 // pred_check
      _
    $region19: #{tpu_custom_call.1} parent=1 // pred_check_branch
      %53 = sbr.rel (0) target = $region21
    $region20: #{tpu_custom_call.1} parent=1 // pred_region
      _
    $region21: #{tpu_custom_call.1} parent=1 // pred_fallthru
      _
    // Predicated region
    $region22: #{tpu_custom_call.1} parent=1 // pred_check
      _
    $region23: #{tpu_custom_call.1} parent=1 // pred_check_branch
      %55 = sbr.rel (0) target = $region25
    $region24: #{tpu_custom_call.1} parent=1 // pred_region
      %57 = dma.done [#allocation3], 16384
    $region25: #{tpu_custom_call.1} parent=1 // pred_fallthru
      _
    // Predicated region
    $region26: #{tpu_custom_call.1} parent=1 // pred_check
      _
    $region27: #{tpu_custom_call.1} parent=1 // pred_check_branch
      %59 = sbr.rel (0) target = $region29
    $region28: #{tpu_custom_call.1} parent=1 // pred_region
      %61 = dma.done [#allocation6], 32
    $region29: #{tpu_custom_call.1} parent=1 // pred_fallthru
      _
    // Predicated region
    $region30: #{tpu_custom_call.1} parent=1 // pred_check
      _
    $region31: #{tpu_custom_call.1} parent=1 // pred_check_branch
      %63 = sbr.rel (0) target = $region33
    $region32: #{tpu_custom_call.1} parent=1 // pred_region
      %65 = dma.done [#allocation6], 1024
    $region33: #{tpu_custom_call.1} parent=1 // pred_fallthru
      _
    %v67 = vld [vmem:[#allocation2] sm:$0xff]
    %v68 = vld [vmem:[#allocation2 + $0x8] sm:$0xff]
    %v69 = vld [vmem:[#allocation2 + $0x10] sm:$0xff]
    %v70 = vld [vmem:[#allocation2 + $0x18] sm:$0xff]
    %v71 = vld [vmem:[#allocation2 + $0x20] sm:$0xff]
    %v72 = vld [vmem:[#allocation2 + $0x28] sm:$0xff]
    %v73 = vld [vmem:[#allocation2 + $0x30] sm:$0xff]
    %v74 = vld [vmem:[#allocation2 + $0x38] sm:$0xff]
    %v75 = vld [vmem:[#allocation2 + $0x40] sm:$0xff]
    %v76 = vld [vmem:[#allocation2 + $0x48] sm:$0xff]
    %v77 = vld [vmem:[#allocation2 + $0x50] sm:$0xff]
    %v78 = vld [vmem:[#allocation2 + $0x58] sm:$0xff]
    %v79 = vld [vmem:[#allocation2 + $0x60] sm:$0xff]
    %v80 = vld [vmem:[#allocation2 + $0x68] sm:$0xff]
    %v81 = vld [vmem:[#allocation2 + $0x70] sm:$0xff]
    %v82 = vld [vmem:[#allocation2 + $0x78] sm:$0xff]
    %v83 = vld [vmem:[#allocation2 + $0x80] sm:$0xff]
    %v84 = vld [vmem:[#allocation2 + $0x88] sm:$0xff]
    %v85 = vld [vmem:[#allocation2 + $0x90] sm:$0xff]
    %v86 = vld [vmem:[#allocation2 + $0x98] sm:$0xff]
    %v87 = vld [vmem:[#allocation2 + $0xa0] sm:$0xff]
    %v88 = vld [vmem:[#allocation2 + $0xa8] sm:$0xff]
    %v89 = vld [vmem:[#allocation2 + $0xb0] sm:$0xff]
    %v90 = vld [vmem:[#allocation2 + $0xb8] sm:$0xff]
    %v91 = vld [vmem:[#allocation2 + $0xc0] sm:$0xff]
    %v92 = vld [vmem:[#allocation2 + $0xc8] sm:$0xff]
    %v93 = vld [vmem:[#allocation2 + $0xd0] sm:$0xff]
    %v94 = vld [vmem:[#allocation2 + $0xd8] sm:$0xff]
    %v95 = vld [vmem:[#allocation2 + $0xe0] sm:$0xff]
    %v96 = vld [vmem:[#allocation2 + $0xe8] sm:$0xff]
    %v97 = vld [vmem:[#allocation2 + $0xf0] sm:$0xff]
    %v98 = vld [vmem:[#allocation2 + $0xf8] sm:$0xff]
    %v99 = vld [vmem:[#allocation2 + $0x100] sm:$0xff]
    %v100 = vld [vmem:[#allocation2 + $0x108] sm:$0xff]
    %v101 = vld [vmem:[#allocation2 + $0x110] sm:$0xff]
    %v102 = vld [vmem:[#allocation2 + $0x118] sm:$0xff]
    %v103 = vld [vmem:[#allocation2 + $0x120] sm:$0xff]
    %v104 = vld [vmem:[#allocation2 + $0x128] sm:$0xff]
    %v105 = vld [vmem:[#allocation2 + $0x130] sm:$0xff]
    %v106 = vld [vmem:[#allocation2 + $0x138] sm:$0xff]
    %v107 = vld [vmem:[#allocation2 + $0x140] sm:$0xff]
    %v108 = vld [vmem:[#allocation2 + $0x148] sm:$0xff]
    %v109 = vld [vmem:[#allocation2 + $0x150] sm:$0xff]
    %v110 = vld [vmem:[#allocation2 + $0x158] sm:$0xff]
    %v111 = vld [vmem:[#allocation2 + $0x160] sm:$0xff]
    %v112 = vld [vmem:[#allocation2 + $0x168] sm:$0xff]
    %v113 = vld [vmem:[#allocation2 + $0x170] sm:$0xff]
    %v114 = vld [vmem:[#allocation2 + $0x178] sm:$0xff]
    %v115 = vld [vmem:[#allocation2 + $0x180] sm:$0xff]
    %v116 = vld [vmem:[#allocation2 + $0x188] sm:$0xff]
    %v117 = vld [vmem:[#allocation2 + $0x190] sm:$0xff]
    %v118 = vld [vmem:[#allocation2 + $0x198] sm:$0xff]
    %v119 = vld [vmem:[#allocation2 + $0x1a0] sm:$0xff]
    %v120 = vld [vmem:[#allocation2 + $0x1a8] sm:$0xff]
    %v121 = vld [vmem:[#allocation2 + $0x1b0] sm:$0xff]
    %v122 = vld [vmem:[#allocation2 + $0x1b8] sm:$0xff]
    %v123 = vld [vmem:[#allocation2 + $0x1c0] sm:$0xff]
    %v124 = vld [vmem:[#allocation2 + $0x1c8] sm:$0xff]
    %v125 = vld [vmem:[#allocation2 + $0x1d0] sm:$0xff]
    %v126 = vld [vmem:[#allocation2 + $0x1d8] sm:$0xff]
    %v127 = vld [vmem:[#allocation2 + $0x1e0] sm:$0xff]
    %v128 = vld [vmem:[#allocation2 + $0x1e8] sm:$0xff]
    %v129 = vld [vmem:[#allocation2 + $0x1f0] sm:$0xff]
    %v130 = vld [vmem:[#allocation2 + $0x1f8] sm:$0xff]
    %v131 = vld [vmem:[#allocation2 + $0x200] sm:$0xff]
    %v132 = vld [vmem:[#allocation2 + $0x208] sm:$0xff]
    %v133 = vld [vmem:[#allocation2 + $0x210] sm:$0xff]
    %v134 = vld [vmem:[#allocation2 + $0x218] sm:$0xff]
    %v135 = vld [vmem:[#allocation2 + $0x220] sm:$0xff]
    %v136 = vld [vmem:[#allocation2 + $0x228] sm:$0xff]
    %v137 = vld [vmem:[#allocation2 + $0x230] sm:$0xff]
    %v138 = vld [vmem:[#allocation2 + $0x238] sm:$0xff]
    %v139 = vld [vmem:[#allocation2 + $0x240] sm:$0xff]
    %v140 = vld [vmem:[#allocation2 + $0x248] sm:$0xff]
    %v141 = vld [vmem:[#allocation2 + $0x250] sm:$0xff]
    %v142 = vld [vmem:[#allocation2 + $0x258] sm:$0xff]
    %v143 = vld [vmem:[#allocation2 + $0x260] sm:$0xff]
    %v144 = vld [vmem:[#allocation2 + $0x268] sm:$0xff]
    %v145 = vld [vmem:[#allocation2 + $0x270] sm:$0xff]
    %v146 = vld [vmem:[#allocation2 + $0x278] sm:$0xff]
    %v147 = vld [vmem:[#allocation2 + $0x280] sm:$0xff]
    %v148 = vld [vmem:[#allocation2 + $0x288] sm:$0xff]
    %v149 = vld [vmem:[#allocation2 + $0x290] sm:$0xff]
    %v150 = vld [vmem:[#allocation2 + $0x298] sm:$0xff]
    %v151 = vld [vmem:[#allocation2 + $0x2a0] sm:$0xff]
    %v152 = vld [vmem:[#allocation2 + $0x2a8] sm:$0xff]
    %v153 = vld [vmem:[#allocation2 + $0x2b0] sm:$0xff]
    %v154 = vld [vmem:[#allocation2 + $0x2b8] sm:$0xff]
    %v155 = vld [vmem:[#allocation2 + $0x2c0] sm:$0xff]
    %v156 = vld [vmem:[#allocation2 + $0x2c8] sm:$0xff]
    %v157 = vld [vmem:[#allocation2 + $0x2d0] sm:$0xff]
    %v158 = vld [vmem:[#allocation2 + $0x2d8] sm:$0xff]
    %v159 = vld [vmem:[#allocation2 + $0x2e0] sm:$0xff]
    %v160 = vld [vmem:[#allocation2 + $0x2e8] sm:$0xff]
    %v161 = vld [vmem:[#allocation2 + $0x2f0] sm:$0xff]
    %v162 = vld [vmem:[#allocation2 + $0x2f8] sm:$0xff]
    %v163 = vld [vmem:[#allocation2 + $0x300] sm:$0xff]
    %v164 = vld [vmem:[#allocation2 + $0x308] sm:$0xff]
    %v165 = vld [vmem:[#allocation2 + $0x310] sm:$0xff]
    %v166 = vld [vmem:[#allocation2 + $0x318] sm:$0xff]
    %v167 = vld [vmem:[#allocation2 + $0x320] sm:$0xff]
    %v168 = vld [vmem:[#allocation2 + $0x328] sm:$0xff]
    %v169 = vld [vmem:[#allocation2 + $0x330] sm:$0xff]
    %v170 = vld [vmem:[#allocation2 + $0x338] sm:$0xff]
    %v171 = vld [vmem:[#allocation2 + $0x340] sm:$0xff]
    %v172 = vld [vmem:[#allocation2 + $0x348] sm:$0xff]
    %v173 = vld [vmem:[#allocation2 + $0x350] sm:$0xff]
    %v174 = vld [vmem:[#allocation2 + $0x358] sm:$0xff]
    %v175 = vld [vmem:[#allocation2 + $0x360] sm:$0xff]
    %v176 = vld [vmem:[#allocation2 + $0x368] sm:$0xff]
    %v177 = vld [vmem:[#allocation2 + $0x370] sm:$0xff]
    %v178 = vld [vmem:[#allocation2 + $0x378] sm:$0xff]
    %v179 = vld [vmem:[#allocation2 + $0x380] sm:$0xff]
    %v180 = vld [vmem:[#allocation2 + $0x388] sm:$0xff]
    %v181 = vld [vmem:[#allocation2 + $0x390] sm:$0xff]
    %v182 = vld [vmem:[#allocation2 + $0x398] sm:$0xff]
    %v183 = vld [vmem:[#allocation2 + $0x3a0] sm:$0xff]
    %v184 = vld [vmem:[#allocation2 + $0x3a8] sm:$0xff]
    %v185 = vld [vmem:[#allocation2 + $0x3b0] sm:$0xff]
    %v186 = vld [vmem:[#allocation2 + $0x3b8] sm:$0xff]
    %v187 = vld [vmem:[#allocation2 + $0x3c0] sm:$0xff]
    %v188 = vld [vmem:[#allocation2 + $0x3c8] sm:$0xff]
    %v189 = vld [vmem:[#allocation2 + $0x3d0] sm:$0xff]
    %v190 = vld [vmem:[#allocation2 + $0x3d8] sm:$0xff]
    %v191 = vld [vmem:[#allocation2 + $0x3e0] sm:$0xff]
    %v192 = vld [vmem:[#allocation2 + $0x3e8] sm:$0xff]
    %v193 = vld [vmem:[#allocation2 + $0x3f0] sm:$0xff]
    %v194 = vld [vmem:[#allocation2 + $0x3f8] sm:$0xff]
    %323 = vst [vmem:[#allocation1] ss:$2 sm:$0xff] %v67
    %v324 = vld.sshfl [vmem:[#allocation1] sm:$0xff pattern:$0x75316420]
    %v325 = vld.sshfl [vmem:[#allocation1 + $0x8] sm:$0xff pattern:$0x75316420]
    %s326 = scalar_lea.vmem [#allocation1], 16
    %327 = vst [vmem:[%s326] ss:$2 sm:$0xff] %v68
    %v328 = vld.sshfl [vmem:[#allocation1 + $0x10] sm:$0xff pattern:$0x75316420]
    %v329 = vld.sshfl [vmem:[#allocation1 + $0x18] sm:$0xff pattern:$0x75316420]
    %s330 = scalar_lea.vmem [#allocation1], 32
    %331 = vst [vmem:[%s330] ss:$2 sm:$0xff] %v69
    %v332 = vld.sshfl [vmem:[#allocation1 + $0x20] sm:$0xff pattern:$0x75316420]
    %v333 = vld.sshfl [vmem:[#allocation1 + $0x28] sm:$0xff pattern:$0x75316420]
    %s334 = scalar_lea.vmem [#allocation1], 48
    %335 = vst [vmem:[%s334] ss:$2 sm:$0xff] %v70
    %v336 = vld.sshfl [vmem:[#allocation1 + $0x30] sm:$0xff pattern:$0x75316420]
    %v337 = vld.sshfl [vmem:[#allocation1 + $0x38] sm:$0xff pattern:$0x75316420]
    %338 = vst [vmem:[#allocation1] ss:$2 sm:$0xff] %v71
    %v339 = vld.sshfl [vmem:[#allocation1] sm:$0xff pattern:$0x75316420]
    %v340 = vld.sshfl [vmem:[#allocation1 + $0x8] sm:$0xff pattern:$0x75316420]
    %341 = vst [vmem:[%s326] ss:$2 sm:$0xff] %v72
    %v342 = vld.sshfl [vmem:[#allocation1 + $0x10] sm:$0xff pattern:$0x75316420]
    %v343 = vld.sshfl [vmem:[#allocation1 + $0x18] sm:$0xff pattern:$0x75316420]
    %344 = vst [vmem:[%s330] ss:$2 sm:$0xff] %v73
    %v345 = vld.sshfl [vmem:[#allocation1 + $0x20] sm:$0xff pattern:$0x75316420]
    %v346 = vld.sshfl [vmem:[#allocation1 + $0x28] sm:$0xff pattern:$0x75316420]
    %347 = vst [vmem:[%s334] ss:$2 sm:$0xff] %v74
    %v348 = vld.sshfl [vmem:[#allocation1 + $0x30] sm:$0xff pattern:$0x75316420]
    %v349 = vld.sshfl [vmem:[#allocation1 + $0x38] sm:$0xff pattern:$0x75316420]
    %350 = vst [vmem:[#allocation1] ss:$2 sm:$0xff] %v75
    %v351 = vld.sshfl [vmem:[#allocation1] sm:$0xff pattern:$0x75316420]
    %v352 = vld.sshfl [vmem:[#allocation1 + $0x8] sm:$0xff pattern:$0x75316420]
    %353 = vst [vmem:[%s326] ss:$2 sm:$0xff] %v76
    %v354 = vld.sshfl [vmem:[#allocation1 + $0x10] sm:$0xff pattern:$0x75316420]
    %v355 = vld.sshfl [vmem:[#allocation1 + $0x18] sm:$0xff pattern:$0x75316420]
    %356 = vst [vmem:[%s330] ss:$2 sm:$0xff] %v77
    %v357 = vld.sshfl [vmem:[#allocation1 + $0x20] sm:$0xff pattern:$0x75316420]
    %v358 = vld.sshfl [vmem:[#allocation1 + $0x28] sm:$0xff pattern:$0x75316420]
    %359 = vst [vmem:[%s334] ss:$2 sm:$0xff] %v78
    %v360 = vld.sshfl [vmem:[#allocation1 + $0x30] sm:$0xff pattern:$0x75316420]
    %v361 = vld.sshfl [vmem:[#allocation1 + $0x38] sm:$0xff pattern:$0x75316420]
    %362 = vst [vmem:[#allocation1] ss:$2 sm:$0xff] %v79
    %v363 = vld.sshfl [vmem:[#allocation1] sm:$0xff pattern:$0x75316420]
    %v364 = vld.sshfl [vmem:[#allocation1 + $0x8] sm:$0xff pattern:$0x75316420]
    %365 = vst [vmem:[%s326] ss:$2 sm:$0xff] %v80
    %v366 = vld.sshfl [vmem:[#allocation1 + $0x10] sm:$0xff pattern:$0x75316420]
    %v367 = vld.sshfl [vmem:[#allocation1 + $0x18] sm:$0xff pattern:$0x75316420]
    %368 = vst [vmem:[%s330] ss:$2 sm:$0xff] %v81
    %v369 = vld.sshfl [vmem:[#allocation1 + $0x20] sm:$0xff pattern:$0x75316420]
    %v370 = vld.sshfl [vmem:[#allocation1 + $0x28] sm:$0xff pattern:$0x75316420]
    %371 = vst [vmem:[%s334] ss:$2 sm:$0xff] %v82
    %v372 = vld.sshfl [vmem:[#allocation1 + $0x30] sm:$0xff pattern:$0x75316420]
    %v373 = vld.sshfl [vmem:[#allocation1 + $0x38] sm:$0xff pattern:$0x75316420]
    %374 = vst [vmem:[#allocation1] ss:$2 sm:$0xff] %v83
    %v375 = vld.sshfl [vmem:[#allocation1] sm:$0xff pattern:$0x75316420]
    %v376 = vld.sshfl [vmem:[#allocation1 + $0x8] sm:$0xff pattern:$0x75316420]
    %377 = vst [vmem:[%s326] ss:$2 sm:$0xff] %v84
    %v378 = vld.sshfl [vmem:[#allocation1 + $0x10] sm:$0xff pattern:$0x75316420]
    %v379 = vld.sshfl [vmem:[#allocation1 + $0x18] sm:$0xff pattern:$0x75316420]
    %380 = vst [vmem:[%s330] ss:$2 sm:$0xff] %v85
    %v381 = vld.sshfl [vmem:[#allocation1 + $0x20] sm:$0xff pattern:$0x75316420]
    %v382 = vld.sshfl [vmem:[#allocation1 + $0x28] sm:$0xff pattern:$0x75316420]
    %383 = vst [vmem:[%s334] ss:$2 sm:$0xff] %v86
    %v384 = vld.sshfl [vmem:[#allocation1 + $0x30] sm:$0xff pattern:$0x75316420]
    %v385 = vld.sshfl [vmem:[#allocation1 + $0x38] sm:$0xff pattern:$0x75316420]
    %386 = vst [vmem:[#allocation1] ss:$2 sm:$0xff] %v87
    %v387 = vld.sshfl [vmem:[#allocation1] sm:$0xff pattern:$0x75316420]
    %v388 = vld.sshfl [vmem:[#allocation1 + $0x8] sm:$0xff pattern:$0x75316420]
    %389 = vst [vmem:[%s326] ss:$2 sm:$0xff] %v88
    %v390 = vld.sshfl [vmem:[#allocation1 + $0x10] sm:$0xff pattern:$0x75316420]
    %v391 = vld.sshfl [vmem:[#allocation1 + $0x18] sm:$0xff pattern:$0x75316420]
    %392 = vst [vmem:[%s330] ss:$2 sm:$0xff] %v89
    %v393 = vld.sshfl [vmem:[#allocation1 + $0x20] sm:$0xff pattern:$0x75316420]
    %v394 = vld.sshfl [vmem:[#allocation1 + $0x28] sm:$0xff pattern:$0x75316420]
    %395 = vst [vmem:[%s334] ss:$2 sm:$0xff] %v90
    %v396 = vld.sshfl [vmem:[#allocation1 + $0x30] sm:$0xff pattern:$0x75316420]
    %v397 = vld.sshfl [vmem:[#allocation1 + $0x38] sm:$0xff pattern:$0x75316420]
    %398 = vst [vmem:[#allocation1] ss:$2 sm:$0xff] %v91
    %v399 = vld.sshfl [vmem:[#allocation1] sm:$0xff pattern:$0x75316420]
    %v400 = vld.sshfl [vmem:[#allocation1 + $0x8] sm:$0xff pattern:$0x75316420]
    %401 = vst [vmem:[%s326] ss:$2 sm:$0xff] %v92
    %v402 = vld.sshfl [vmem:[#allocation1 + $0x10] sm:$0xff pattern:$0x75316420]
    %v403 = vld.sshfl [vmem:[#allocation1 + $0x18] sm:$0xff pattern:$0x75316420]
    %404 = vst [vmem:[%s330] ss:$2 sm:$0xff] %v93
    %v405 = vld.sshfl [vmem:[#allocation1 + $0x20] sm:$0xff pattern:$0x75316420]
    %v406 = vld.sshfl [vmem:[#allocation1 + $0x28] sm:$0xff pattern:$0x75316420]
    %407 = vst [vmem:[%s334] ss:$2 sm:$0xff] %v94
    %v408 = vld.sshfl [vmem:[#allocation1 + $0x30] sm:$0xff pattern:$0x75316420]
    %v409 = vld.sshfl [vmem:[#allocation1 + $0x38] sm:$0xff pattern:$0x75316420]
    %410 = vst [vmem:[#allocation1] ss:$2 sm:$0xff] %v95
    %v411 = vld.sshfl [vmem:[#allocation1] sm:$0xff pattern:$0x75316420]
    %v412 = vld.sshfl [vmem:[#allocation1 + $0x8] sm:$0xff pattern:$0x75316420]
    %413 = vst [vmem:[%s326] ss:$2 sm:$0xff] %v96
    %v414 = vld.sshfl [vmem:[#allocation1 + $0x10] sm:$0xff pattern:$0x75316420]
    %v415 = vld.sshfl [vmem:[#allocation1 + $0x18] sm:$0xff pattern:$0x75316420]
    %416 = vst [vmem:[%s330] ss:$2 sm:$0xff] %v97
    %v417 = vld.sshfl [vmem:[#allocation1 + $0x20] sm:$0xff pattern:$0x75316420]
    %v418 = vld.sshfl [vmem:[#allocation1 + $0x28] sm:$0xff pattern:$0x75316420]
    %419 = vst [vmem:[%s334] ss:$2 sm:$0xff] %v98
    %v420 = vld.sshfl [vmem:[#allocation1 + $0x30] sm:$0xff pattern:$0x75316420]
    %v421 = vld.sshfl [vmem:[#allocation1 + $0x38] sm:$0xff pattern:$0x75316420]
    %422 = vst [vmem:[#allocation1] ss:$2 sm:$0xff] %v99
    %v423 = vld.sshfl [vmem:[#allocation1] sm:$0xff pattern:$0x75316420]
    %v424 = vld.sshfl [vmem:[#allocation1 + $0x8] sm:$0xff pattern:$0x75316420]
    %425 = vst [vmem:[%s326] ss:$2 sm:$0xff] %v100
    %v426 = vld.sshfl [vmem:[#allocation1 + $0x10] sm:$0xff pattern:$0x75316420]
    %v427 = vld.sshfl [vmem:[#allocation1 + $0x18] sm:$0xff pattern:$0x75316420]
    %428 = vst [vmem:[%s330] ss:$2 sm:$0xff] %v101
    %v429 = vld.sshfl [vmem:[#allocation1 + $0x20] sm:$0xff pattern:$0x75316420]
    %v430 = vld.sshfl [vmem:[#allocation1 + $0x28] sm:$0xff pattern:$0x75316420]
    %431 = vst [vmem:[%s334] ss:$2 sm:$0xff] %v102
    %v432 = vld.sshfl [vmem:[#allocation1 + $0x30] sm:$0xff pattern:$0x75316420]
    %v433 = vld.sshfl [vmem:[#allocation1 + $0x38] sm:$0xff pattern:$0x75316420]
    %434 = vst [vmem:[#allocation1] ss:$2 sm:$0xff] %v103
    %v435 = vld.sshfl [vmem:[#allocation1] sm:$0xff pattern:$0x75316420]
    %v436 = vld.sshfl [vmem:[#allocation1 + $0x8] sm:$0xff pattern:$0x75316420]
    %437 = vst [vmem:[%s326] ss:$2 sm:$0xff] %v104
    %v438 = vld.sshfl [vmem:[#allocation1 + $0x10] sm:$0xff pattern:$0x75316420]
    %v439 = vld.sshfl [vmem:[#allocation1 + $0x18] sm:$0xff pattern:$0x75316420]
    %440 = vst [vmem:[%s330] ss:$2 sm:$0xff] %v105
    %v441 = vld.sshfl [vmem:[#allocation1 + $0x20] sm:$0xff pattern:$0x75316420]
    %v442 = vld.sshfl [vmem:[#allocation1 + $0x28] sm:$0xff pattern:$0x75316420]
    %443 = vst [vmem:[%s334] ss:$2 sm:$0xff] %v106
    %v444 = vld.sshfl [vmem:[#allocation1 + $0x30] sm:$0xff pattern:$0x75316420]
    %v445 = vld.sshfl [vmem:[#allocation1 + $0x38] sm:$0xff pattern:$0x75316420]
    %446 = vst [vmem:[#allocation1] ss:$2 sm:$0xff] %v107
    %v447 = vld.sshfl [vmem:[#allocation1] sm:$0xff pattern:$0x75316420]
    %v448 = vld.sshfl [vmem:[#allocation1 + $0x8] sm:$0xff pattern:$0x75316420]
    %449 = vst [vmem:[%s326] ss:$2 sm:$0xff] %v108
    %v450 = vld.sshfl [vmem:[#allocation1 + $0x10] sm:$0xff pattern:$0x75316420]
    %v451 = vld.sshfl [vmem:[#allocation1 + $0x18] sm:$0xff pattern:$0x75316420]
    %452 = vst [vmem:[%s330] ss:$2 sm:$0xff] %v109
    %v453 = vld.sshfl [vmem:[#allocation1 + $0x20] sm:$0xff pattern:$0x75316420]
    %v454 = vld.sshfl [vmem:[#allocation1 + $0x28] sm:$0xff pattern:$0x75316420]
    %455 = vst [vmem:[%s334] ss:$2 sm:$0xff] %v110
    %v456 = vld.sshfl [vmem:[#allocation1 + $0x30] sm:$0xff pattern:$0x75316420]
    %v457 = vld.sshfl [vmem:[#allocation1 + $0x38] sm:$0xff pattern:$0x75316420]
    %458 = vst [vmem:[#allocation1] ss:$2 sm:$0xff] %v111
    %v459 = vld.sshfl [vmem:[#allocation1] sm:$0xff pattern:$0x75316420]
    %v460 = vld.sshfl [vmem:[#allocation1 + $0x8] sm:$0xff pattern:$0x75316420]
    %461 = vst [vmem:[%s326] ss:$2 sm:$0xff] %v112
    %v462 = vld.sshfl [vmem:[#allocation1 + $0x10] sm:$0xff pattern:$0x75316420]
    %v463 = vld.sshfl [vmem:[#allocation1 + $0x18] sm:$0xff pattern:$0x75316420]
    %464 = vst [vmem:[%s330] ss:$2 sm:$0xff] %v113
    %v465 = vld.sshfl [vmem:[#allocation1 + $0x20] sm:$0xff pattern:$0x75316420]
    %v466 = vld.sshfl [vmem:[#allocation1 + $0x28] sm:$0xff pattern:$0x75316420]
    %467 = vst [vmem:[%s334] ss:$2 sm:$0xff] %v114
    %v468 = vld.sshfl [vmem:[#allocation1 + $0x30] sm:$0xff pattern:$0x75316420]
    %v469 = vld.sshfl [vmem:[#allocation1 + $0x38] sm:$0xff pattern:$0x75316420]
    %470 = vst [vmem:[#allocation1] ss:$2 sm:$0xff] %v115
    %v471 = vld.sshfl [vmem:[#allocation1] sm:$0xff pattern:$0x75316420]
    %v472 = vld.sshfl [vmem:[#allocation1 + $0x8] sm:$0xff pattern:$0x75316420]
    %473 = vst [vmem:[%s326] ss:$2 sm:$0xff] %v116
    %v474 = vld.sshfl [vmem:[#allocation1 + $0x10] sm:$0xff pattern:$0x75316420]
    %v475 = vld.sshfl [vmem:[#allocation1 + $0x18] sm:$0xff pattern:$0x75316420]
    %476 = vst [vmem:[%s330] ss:$2 sm:$0xff] %v117
    %v477 = vld.sshfl [vmem:[#allocation1 + $0x20] sm:$0xff pattern:$0x75316420]
    %v478 = vld.sshfl [vmem:[#allocation1 + $0x28] sm:$0xff pattern:$0x75316420]
    %479 = vst [vmem:[%s334] ss:$2 sm:$0xff] %v118
    %v480 = vld.sshfl [vmem:[#allocation1 + $0x30] sm:$0xff pattern:$0x75316420]
    %v481 = vld.sshfl [vmem:[#allocation1 + $0x38] sm:$0xff pattern:$0x75316420]
    %482 = vst [vmem:[#allocation1] ss:$2 sm:$0xff] %v119
    %v483 = vld.sshfl [vmem:[#allocation1] sm:$0xff pattern:$0x75316420]
    %v484 = vld.sshfl [vmem:[#allocation1 + $0x8] sm:$0xff pattern:$0x75316420]
    %485 = vst [vmem:[%s326] ss:$2 sm:$0xff] %v120
    %v486 = vld.sshfl [vmem:[#allocation1 + $0x10] sm:$0xff pattern:$0x75316420]
    %v487 = vld.sshfl [vmem:[#allocation1 + $0x18] sm:$0xff pattern:$0x75316420]
    %488 = vst [vmem:[%s330] ss:$2 sm:$0xff] %v121
    %v489 = vld.sshfl [vmem:[#allocation1 + $0x20] sm:$0xff pattern:$0x75316420]
    %v490 = vld.sshfl [vmem:[#allocation1 + $0x28] sm:$0xff pattern:$0x75316420]
    %491 = vst [vmem:[%s334] ss:$2 sm:$0xff] %v122
    %v492 = vld.sshfl [vmem:[#allocation1 + $0x30] sm:$0xff pattern:$0x75316420]
    %v493 = vld.sshfl [vmem:[#allocation1 + $0x38] sm:$0xff pattern:$0x75316420]
    %494 = vst [vmem:[#allocation1] ss:$2 sm:$0xff] %v123
    %v495 = vld.sshfl [vmem:[#allocation1] sm:$0xff pattern:$0x75316420]
    %v496 = vld.sshfl [vmem:[#allocation1 + $0x8] sm:$0xff pattern:$0x75316420]
    %497 = vst [vmem:[%s326] ss:$2 sm:$0xff] %v124
    %v498 = vld.sshfl [vmem:[#allocation1 + $0x10] sm:$0xff pattern:$0x75316420]
    %v499 = vld.sshfl [vmem:[#allocation1 + $0x18] sm:$0xff pattern:$0x75316420]
    %500 = vst [vmem:[%s330] ss:$2 sm:$0xff] %v125
    %v501 = vld.sshfl [vmem:[#allocation1 + $0x20] sm:$0xff pattern:$0x75316420]
    %v502 = vld.sshfl [vmem:[#allocation1 + $0x28] sm:$0xff pattern:$0x75316420]
    %503 = vst [vmem:[%s334] ss:$2 sm:$0xff] %v126
    %v504 = vld.sshfl [vmem:[#allocation1 + $0x30] sm:$0xff pattern:$0x75316420]
    %v505 = vld.sshfl [vmem:[#allocation1 + $0x38] sm:$0xff pattern:$0x75316420]
    %506 = vst [vmem:[#allocation1] ss:$2 sm:$0xff] %v127
    %v507 = vld.sshfl [vmem:[#allocation1] sm:$0xff pattern:$0x75316420]
    %v508 = vld.sshfl [vmem:[#allocation1 + $0x8] sm:$0xff pattern:$0x75316420]
    %509 = vst [vmem:[%s326] ss:$2 sm:$0xff] %v128
    %v510 = vld.sshfl [vmem:[#allocation1 + $0x10] sm:$0xff pattern:$0x75316420]
    %v511 = vld.sshfl [vmem:[#allocation1 + $0x18] sm:$0xff pattern:$0x75316420]
    %512 = vst [vmem:[%s330] ss:$2 sm:$0xff] %v129
    %v513 = vld.sshfl [vmem:[#allocation1 + $0x20] sm:$0xff pattern:$0x75316420]
    %v514 = vld.sshfl [vmem:[#allocation1 + $0x28] sm:$0xff pattern:$0x75316420]
    %515 = vst [vmem:[%s334] ss:$2 sm:$0xff] %v130
    %v516 = vld.sshfl [vmem:[#allocation1 + $0x30] sm:$0xff pattern:$0x75316420]
    %v517 = vld.sshfl [vmem:[#allocation1 + $0x38] sm:$0xff pattern:$0x75316420]
    %518 = vst [vmem:[#allocation1] ss:$2 sm:$0xff] %v131
    %v519 = vld.sshfl [vmem:[#allocation1] sm:$0xff pattern:$0x75316420]
    %v520 = vld.sshfl [vmem:[#allocation1 + $0x8] sm:$0xff pattern:$0x75316420]
    %521 = vst [vmem:[%s326] ss:$2 sm:$0xff] %v132
    %v522 = vld.sshfl [vmem:[#allocation1 + $0x10] sm:$0xff pattern:$0x75316420]
    %v523 = vld.sshfl [vmem:[#allocation1 + $0x18] sm:$0xff pattern:$0x75316420]
    %524 = vst [vmem:[%s330] ss:$2 sm:$0xff] %v133
    %v525 = vld.sshfl [vmem:[#allocation1 + $0x20] sm:$0xff pattern:$0x75316420]
    %v526 = vld.sshfl [vmem:[#allocation1 + $0x28] sm:$0xff pattern:$0x75316420]
    %527 = vst [vmem:[%s334] ss:$2 sm:$0xff] %v134
    %v528 = vld.sshfl [vmem:[#allocation1 + $0x30] sm:$0xff pattern:$0x75316420]
    %v529 = vld.sshfl [vmem:[#allocation1 + $0x38] sm:$0xff pattern:$0x75316420]
    %530 = vst [vmem:[#allocation1] ss:$2 sm:$0xff] %v135
    %v531 = vld.sshfl [vmem:[#allocation1] sm:$0xff pattern:$0x75316420]
    %v532 = vld.sshfl [vmem:[#allocation1 + $0x8] sm:$0xff pattern:$0x75316420]
    %533 = vst [vmem:[%s326] ss:$2 sm:$0xff] %v136
    %v534 = vld.sshfl [vmem:[#allocation1 + $0x10] sm:$0xff pattern:$0x75316420]
    %v535 = vld.sshfl [vmem:[#allocation1 + $0x18] sm:$0xff pattern:$0x75316420]
    %536 = vst [vmem:[%s330] ss:$2 sm:$0xff] %v137
    %v537 = vld.sshfl [vmem:[#allocation1 + $0x20] sm:$0xff pattern:$0x75316420]
    %v538 = vld.sshfl [vmem:[#allocation1 + $0x28] sm:$0xff pattern:$0x75316420]
    %539 = vst [vmem:[%s334] ss:$2 sm:$0xff] %v138
    %v540 = vld.sshfl [vmem:[#allocation1 + $0x30] sm:$0xff pattern:$0x75316420]
    %v541 = vld.sshfl [vmem:[#allocation1 + $0x38] sm:$0xff pattern:$0x75316420]
    %542 = vst [vmem:[#allocation1] ss:$2 sm:$0xff] %v139
    %v543 = vld.sshfl [vmem:[#allocation1] sm:$0xff pattern:$0x75316420]
    %v544 = vld.sshfl [vmem:[#allocation1 + $0x8] sm:$0xff pattern:$0x75316420]
    %545 = vst [vmem:[%s326] ss:$2 sm:$0xff] %v140
    %v546 = vld.sshfl [vmem:[#allocation1 + $0x10] sm:$0xff pattern:$0x75316420]
    %v547 = vld.sshfl [vmem:[#allocation1 + $0x18] sm:$0xff pattern:$0x75316420]
    %548 = vst [vmem:[%s330] ss:$2 sm:$0xff] %v141
    %v549 = vld.sshfl [vmem:[#allocation1 + $0x20] sm:$0xff pattern:$0x75316420]
    %v550 = vld.sshfl [vmem:[#allocation1 + $0x28] sm:$0xff pattern:$0x75316420]
    %551 = vst [vmem:[%s334] ss:$2 sm:$0xff] %v142
    %v552 = vld.sshfl [vmem:[#allocation1 + $0x30] sm:$0xff pattern:$0x75316420]
    %v553 = vld.sshfl [vmem:[#allocation1 + $0x38] sm:$0xff pattern:$0x75316420]
    %554 = vst [vmem:[#allocation1] ss:$2 sm:$0xff] %v143
    %v555 = vld.sshfl [vmem:[#allocation1] sm:$0xff pattern:$0x75316420]
    %v556 = vld.sshfl [vmem:[#allocation1 + $0x8] sm:$0xff pattern:$0x75316420]
    %557 = vst [vmem:[%s326] ss:$2 sm:$0xff] %v144
    %v558 = vld.sshfl [vmem:[#allocation1 + $0x10] sm:$0xff pattern:$0x75316420]
    %v559 = vld.sshfl [vmem:[#allocation1 + $0x18] sm:$0xff pattern:$0x75316420]
    %560 = vst [vmem:[%s330] ss:$2 sm:$0xff] %v145
    %v561 = vld.sshfl [vmem:[#allocation1 + $0x20] sm:$0xff pattern:$0x75316420]
    %v562 = vld.sshfl [vmem:[#allocation1 + $0x28] sm:$0xff pattern:$0x75316420]
    %563 = vst [vmem:[%s334] ss:$2 sm:$0xff] %v146
    %v564 = vld.sshfl [vmem:[#allocation1 + $0x30] sm:$0xff pattern:$0x75316420]
    %v565 = vld.sshfl [vmem:[#allocation1 + $0x38] sm:$0xff pattern:$0x75316420]
    %566 = vst [vmem:[#allocation1] ss:$2 sm:$0xff] %v147
    %v567 = vld.sshfl [vmem:[#allocation1] sm:$0xff pattern:$0x75316420]
    %v568 = vld.sshfl [vmem:[#allocation1 + $0x8] sm:$0xff pattern:$0x75316420]
    %569 = vst [vmem:[%s326] ss:$2 sm:$0xff] %v148
    %v570 = vld.sshfl [vmem:[#allocation1 + $0x10] sm:$0xff pattern:$0x75316420]
    %v571 = vld.sshfl [vmem:[#allocation1 + $0x18] sm:$0xff pattern:$0x75316420]
    %572 = vst [vmem:[%s330] ss:$2 sm:$0xff] %v149
    %v573 = vld.sshfl [vmem:[#allocation1 + $0x20] sm:$0xff pattern:$0x75316420]
    %v574 = vld.sshfl [vmem:[#allocation1 + $0x28] sm:$0xff pattern:$0x75316420]
    %575 = vst [vmem:[%s334] ss:$2 sm:$0xff] %v150
    %v576 = vld.sshfl [vmem:[#allocation1 + $0x30] sm:$0xff pattern:$0x75316420]
    %v577 = vld.sshfl [vmem:[#allocation1 + $0x38] sm:$0xff pattern:$0x75316420]
    %578 = vst [vmem:[#allocation1] ss:$2 sm:$0xff] %v151
    %v579 = vld.sshfl [vmem:[#allocation1] sm:$0xff pattern:$0x75316420]
    %v580 = vld.sshfl [vmem:[#allocation1 + $0x8] sm:$0xff pattern:$0x75316420]
    %581 = vst [vmem:[%s326] ss:$2 sm:$0xff] %v152
    %v582 = vld.sshfl [vmem:[#allocation1 + $0x10] sm:$0xff pattern:$0x75316420]
    %v583 = vld.sshfl [vmem:[#allocation1 + $0x18] sm:$0xff pattern:$0x75316420]
    %584 = vst [vmem:[%s330] ss:$2 sm:$0xff] %v153
    %v585 = vld.sshfl [vmem:[#allocation1 + $0x20] sm:$0xff pattern:$0x75316420]
    %v586 = vld.sshfl [vmem:[#allocation1 + $0x28] sm:$0xff pattern:$0x75316420]
    %587 = vst [vmem:[%s334] ss:$2 sm:$0xff] %v154
    %v588 = vld.sshfl [vmem:[#allocation1 + $0x30] sm:$0xff pattern:$0x75316420]
    %v589 = vld.sshfl [vmem:[#allocation1 + $0x38] sm:$0xff pattern:$0x75316420]
    %590 = vst [vmem:[#allocation1] ss:$2 sm:$0xff] %v155
    %v591 = vld.sshfl [vmem:[#allocation1] sm:$0xff pattern:$0x75316420]
    %v592 = vld.sshfl [vmem:[#allocation1 + $0x8] sm:$0xff pattern:$0x75316420]
    %593 = vst [vmem:[%s326] ss:$2 sm:$0xff] %v156
    %v594 = vld.sshfl [vmem:[#allocation1 + $0x10] sm:$0xff pattern:$0x75316420]
    %v595 = vld.sshfl [vmem:[#allocation1 + $0x18] sm:$0xff pattern:$0x75316420]
    %596 = vst [vmem:[%s330] ss:$2 sm:$0xff] %v157
    %v597 = vld.sshfl [vmem:[#allocation1 + $0x20] sm:$0xff pattern:$0x75316420]
    %v598 = vld.sshfl [vmem:[#allocation1 + $0x28] sm:$0xff pattern:$0x75316420]
    %599 = vst [vmem:[%s334] ss:$2 sm:$0xff] %v158
    %v600 = vld.sshfl [vmem:[#allocation1 + $0x30] sm:$0xff pattern:$0x75316420]
    %v601 = vld.sshfl [vmem:[#allocation1 + $0x38] sm:$0xff pattern:$0x75316420]
    %602 = vst [vmem:[#allocation1] ss:$2 sm:$0xff] %v159
    %v603 = vld.sshfl [vmem:[#allocation1] sm:$0xff pattern:$0x75316420]
    %v604 = vld.sshfl [vmem:[#allocation1 + $0x8] sm:$0xff pattern:$0x75316420]
    %605 = vst [vmem:[%s326] ss:$2 sm:$0xff] %v160
    %v606 = vld.sshfl [vmem:[#allocation1 + $0x10] sm:$0xff pattern:$0x75316420]
    %v607 = vld.sshfl [vmem:[#allocation1 + $0x18] sm:$0xff pattern:$0x75316420]
    %608 = vst [vmem:[%s330] ss:$2 sm:$0xff] %v161
    %v609 = vld.sshfl [vmem:[#allocation1 + $0x20] sm:$0xff pattern:$0x75316420]
    %v610 = vld.sshfl [vmem:[#allocation1 + $0x28] sm:$0xff pattern:$0x75316420]
    %611 = vst [vmem:[%s334] ss:$2 sm:$0xff] %v162
    %v612 = vld.sshfl [vmem:[#allocation1 + $0x30] sm:$0xff pattern:$0x75316420]
    %v613 = vld.sshfl [vmem:[#allocation1 + $0x38] sm:$0xff pattern:$0x75316420]
    %614 = vst [vmem:[#allocation1] ss:$2 sm:$0xff] %v163
    %v615 = vld.sshfl [vmem:[#allocation1] sm:$0xff pattern:$0x75316420]
    %v616 = vld.sshfl [vmem:[#allocation1 + $0x8] sm:$0xff pattern:$0x75316420]
    %617 = vst [vmem:[%s326] ss:$2 sm:$0xff] %v164
    %v618 = vld.sshfl [vmem:[#allocation1 + $0x10] sm:$0xff pattern:$0x75316420]
    %v619 = vld.sshfl [vmem:[#allocation1 + $0x18] sm:$0xff pattern:$0x75316420]
    %620 = vst [vmem:[%s330] ss:$2 sm:$0xff] %v165
    %v621 = vld.sshfl [vmem:[#allocation1 + $0x20] sm:$0xff pattern:$0x75316420]
    %v622 = vld.sshfl [vmem:[#allocation1 + $0x28] sm:$0xff pattern:$0x75316420]
    %623 = vst [vmem:[%s334] ss:$2 sm:$0xff] %v166
    %v624 = vld.sshfl [vmem:[#allocation1 + $0x30] sm:$0xff pattern:$0x75316420]
    %v625 = vld.sshfl [vmem:[#allocation1 + $0x38] sm:$0xff pattern:$0x75316420]
    %626 = vst [vmem:[#allocation1] ss:$2 sm:$0xff] %v167
    %v627 = vld.sshfl [vmem:[#allocation1] sm:$0xff pattern:$0x75316420]
    %v628 = vld.sshfl [vmem:[#allocation1 + $0x8] sm:$0xff pattern:$0x75316420]
    %629 = vst [vmem:[%s326] ss:$2 sm:$0xff] %v168
    %v630 = vld.sshfl [vmem:[#allocation1 + $0x10] sm:$0xff pattern:$0x75316420]
    %v631 = vld.sshfl [vmem:[#allocation1 + $0x18] sm:$0xff pattern:$0x75316420]
    %632 = vst [vmem:[%s330] ss:$2 sm:$0xff] %v169
    %v633 = vld.sshfl [vmem:[#allocation1 + $0x20] sm:$0xff pattern:$0x75316420]
    %v634 = vld.sshfl [vmem:[#allocation1 + $0x28] sm:$0xff pattern:$0x75316420]
    %635 = vst [vmem:[%s334] ss:$2 sm:$0xff] %v170
    %v636 = vld.sshfl [vmem:[#allocation1 + $0x30] sm:$0xff pattern:$0x75316420]
    %v637 = vld.sshfl [vmem:[#allocation1 + $0x38] sm:$0xff pattern:$0x75316420]
    %638 = vst [vmem:[#allocation1] ss:$2 sm:$0xff] %v171
    %v639 = vld.sshfl [vmem:[#allocation1] sm:$0xff pattern:$0x75316420]
    %v640 = vld.sshfl [vmem:[#allocation1 + $0x8] sm:$0xff pattern:$0x75316420]
    %641 = vst [vmem:[%s326] ss:$2 sm:$0xff] %v172
    %v642 = vld.sshfl [vmem:[#allocation1 + $0x10] sm:$0xff pattern:$0x75316420]
    %v643 = vld.sshfl [vmem:[#allocation1 + $0x18] sm:$0xff pattern:$0x75316420]
    %644 = vst [vmem:[%s330] ss:$2 sm:$0xff] %v173
    %v645 = vld.sshfl [vmem:[#allocation1 + $0x20] sm:$0xff pattern:$0x75316420]
    %v646 = vld.sshfl [vmem:[#allocation1 + $0x28] sm:$0xff pattern:$0x75316420]
    %647 = vst [vmem:[%s334] ss:$2 sm:$0xff] %v174
    %v648 = vld.sshfl [vmem:[#allocation1 + $0x30] sm:$0xff pattern:$0x75316420]
    %v649 = vld.sshfl [vmem:[#allocation1 + $0x38] sm:$0xff pattern:$0x75316420]
    %650 = vst [vmem:[#allocation1] ss:$2 sm:$0xff] %v175
    %v651 = vld.sshfl [vmem:[#allocation1] sm:$0xff pattern:$0x75316420]
    %v652 = vld.sshfl [vmem:[#allocation1 + $0x8] sm:$0xff pattern:$0x75316420]
    %653 = vst [vmem:[%s326] ss:$2 sm:$0xff] %v176
    %v654 = vld.sshfl [vmem:[#allocation1 + $0x10] sm:$0xff pattern:$0x75316420]
    %v655 = vld.sshfl [vmem:[#allocation1 + $0x18] sm:$0xff pattern:$0x75316420]
    %656 = vst [vmem:[%s330] ss:$2 sm:$0xff] %v177
    %v657 = vld.sshfl [vmem:[#allocation1 + $0x20] sm:$0xff pattern:$0x75316420]
    %v658 = vld.sshfl [vmem:[#allocation1 + $0x28] sm:$0xff pattern:$0x75316420]
    %659 = vst [vmem:[%s334] ss:$2 sm:$0xff] %v178
    %v660 = vld.sshfl [vmem:[#allocation1 + $0x30] sm:$0xff pattern:$0x75316420]
    %v661 = vld.sshfl [vmem:[#allocation1 + $0x38] sm:$0xff pattern:$0x75316420]
    %662 = vst [vmem:[#allocation1] ss:$2 sm:$0xff] %v179
    %v663 = vld.sshfl [vmem:[#allocation1] sm:$0xff pattern:$0x75316420]
    %v664 = vld.sshfl [vmem:[#allocation1 + $0x8] sm:$0xff pattern:$0x75316420]
    %665 = vst [vmem:[%s326] ss:$2 sm:$0xff] %v180
    %v666 = vld.sshfl [vmem:[#allocation1 + $0x10] sm:$0xff pattern:$0x75316420]
    %v667 = vld.sshfl [vmem:[#allocation1 + $0x18] sm:$0xff pattern:$0x75316420]
    %668 = vst [vmem:[%s330] ss:$2 sm:$0xff] %v181
    %v669 = vld.sshfl [vmem:[#allocation1 + $0x20] sm:$0xff pattern:$0x75316420]
    %v670 = vld.sshfl [vmem:[#allocation1 + $0x28] sm:$0xff pattern:$0x75316420]
    %671 = vst [vmem:[%s334] ss:$2 sm:$0xff] %v182
    %v672 = vld.sshfl [vmem:[#allocation1 + $0x30] sm:$0xff pattern:$0x75316420]
    %v673 = vld.sshfl [vmem:[#allocation1 + $0x38] sm:$0xff pattern:$0x75316420]
    %674 = vst [vmem:[#allocation1] ss:$2 sm:$0xff] %v183
    %v675 = vld.sshfl [vmem:[#allocation1] sm:$0xff pattern:$0x75316420]
    %v676 = vld.sshfl [vmem:[#allocation1 + $0x8] sm:$0xff pattern:$0x75316420]
    %677 = vst [vmem:[%s326] ss:$2 sm:$0xff] %v184
    %v678 = vld.sshfl [vmem:[#allocation1 + $0x10] sm:$0xff pattern:$0x75316420]
    %v679 = vld.sshfl [vmem:[#allocation1 + $0x18] sm:$0xff pattern:$0x75316420]
    %680 = vst [vmem:[%s330] ss:$2 sm:$0xff] %v185
    %v681 = vld.sshfl [vmem:[#allocation1 + $0x20] sm:$0xff pattern:$0x75316420]
    %v682 = vld.sshfl [vmem:[#allocation1 + $0x28] sm:$0xff pattern:$0x75316420]
    %683 = vst [vmem:[%s334] ss:$2 sm:$0xff] %v186
    %v684 = vld.sshfl [vmem:[#allocation1 + $0x30] sm:$0xff pattern:$0x75316420]
    %v685 = vld.sshfl [vmem:[#allocation1 + $0x38] sm:$0xff pattern:$0x75316420]
    %686 = vst [vmem:[#allocation1] ss:$2 sm:$0xff] %v187
    %v687 = vld.sshfl [vmem:[#allocation1] sm:$0xff pattern:$0x75316420]
    %v688 = vld.sshfl [vmem:[#allocation1 + $0x8] sm:$0xff pattern:$0x75316420]
    %689 = vst [vmem:[%s326] ss:$2 sm:$0xff] %v188
    %v690 = vld.sshfl [vmem:[#allocation1 + $0x10] sm:$0xff pattern:$0x75316420]
    %v691 = vld.sshfl [vmem:[#allocation1 + $0x18] sm:$0xff pattern:$0x75316420]
    %692 = vst [vmem:[%s330] ss:$2 sm:$0xff] %v189
    %v693 = vld.sshfl [vmem:[#allocation1 + $0x20] sm:$0xff pattern:$0x75316420]
    %v694 = vld.sshfl [vmem:[#allocation1 + $0x28] sm:$0xff pattern:$0x75316420]
    %695 = vst [vmem:[%s334] ss:$2 sm:$0xff] %v190
    %v696 = vld.sshfl [vmem:[#allocation1 + $0x30] sm:$0xff pattern:$0x75316420]
    %v697 = vld.sshfl [vmem:[#allocation1 + $0x38] sm:$0xff pattern:$0x75316420]
    %698 = vst [vmem:[#allocation1] ss:$2 sm:$0xff] %v191
    %v699 = vld.sshfl [vmem:[#allocation1] sm:$0xff pattern:$0x75316420]
    %v700 = vld.sshfl [vmem:[#allocation1 + $0x8] sm:$0xff pattern:$0x75316420]
    %701 = vst [vmem:[%s326] ss:$2 sm:$0xff] %v192
    %v702 = vld.sshfl [vmem:[#allocation1 + $0x10] sm:$0xff pattern:$0x75316420]
    %v703 = vld.sshfl [vmem:[#allocation1 + $0x18] sm:$0xff pattern:$0x75316420]
    %704 = vst [vmem:[%s330] ss:$2 sm:$0xff] %v193
    %v705 = vld.sshfl [vmem:[#allocation1 + $0x20] sm:$0xff pattern:$0x75316420]
    %v706 = vld.sshfl [vmem:[#allocation1 + $0x28] sm:$0xff pattern:$0x75316420]
    %707 = vst [vmem:[%s334] ss:$2 sm:$0xff] %v194
    %v708 = vld.sshfl [vmem:[#allocation1 + $0x30] sm:$0xff pattern:$0x75316420]
    %v709 = vld.sshfl [vmem:[#allocation1 + $0x38] sm:$0xff pattern:$0x75316420]
    %vm966 = vcmask 1043456
    %v967 = vsel %vm966, %v324, 0.0
    %v968 = vsel %vm966, %v325, 0.0
    %v969 = vadd.f32 %v967, %v968
    %970 = vadd.xlane.f32.xlu0 %v969
    %v971 = vpop.xlane.xlu0 %970
    %v972 = vsel %vm966, %v328, 0.0
    %v973 = vsel %vm966, %v329, 0.0
    %v974 = vadd.f32 %v972, %v973
    %975 = vadd.xlane.f32.xlu0 %v974
    %v976 = vpop.xlane.xlu0 %975
    %v977 = vsel %vm966, %v332, 0.0
    %v978 = vsel %vm966, %v333, 0.0
    %v979 = vadd.f32 %v977, %v978
    %980 = vadd.xlane.f32.xlu0 %v979
    %v981 = vpop.xlane.xlu0 %980
    %v982 = vsel %vm966, %v336, 0.0
    %v983 = vsel %vm966, %v337, 0.0
    %v984 = vadd.f32 %v982, %v983
    %985 = vadd.xlane.f32.xlu0 %v984
    %v986 = vpop.xlane.xlu0 %985
    %v987 = vsel %vm966, %v339, 0.0
    %v988 = vsel %vm966, %v340, 0.0
    %v989 = vadd.f32 %v987, %v988
    %990 = vadd.xlane.f32.xlu0 %v989
    %v991 = vpop.xlane.xlu0 %990
    %v992 = vsel %vm966, %v342, 0.0
    %v993 = vsel %vm966, %v343, 0.0
    %v994 = vadd.f32 %v992, %v993
    %995 = vadd.xlane.f32.xlu0 %v994
    %v996 = vpop.xlane.xlu0 %995
    %v997 = vsel %vm966, %v345, 0.0
    %v998 = vsel %vm966, %v346, 0.0
    %v999 = vadd.f32 %v997, %v998
    %1000 = vadd.xlane.f32.xlu0 %v999
    %v1001 = vpop.xlane.xlu0 %1000
    %v1002 = vsel %vm966, %v348, 0.0
    %v1003 = vsel %vm966, %v349, 0.0
    %v1004 = vadd.f32 %v1002, %v1003
    %1005 = vadd.xlane.f32.xlu0 %v1004
    %v1006 = vpop.xlane.xlu0 %1005
    %v1007 = vsel %vm966, %v351, 0.0
    %v1008 = vsel %vm966, %v352, 0.0
    %v1009 = vadd.f32 %v1007, %v1008
    %1010 = vadd.xlane.f32.xlu0 %v1009
    %v1011 = vpop.xlane.xlu0 %1010
    %v1012 = vsel %vm966, %v354, 0.0
    %v1013 = vsel %vm966, %v355, 0.0
    %v1014 = vadd.f32 %v1012, %v1013
    %1015 = vadd.xlane.f32.xlu0 %v1014
    %v1016 = vpop.xlane.xlu0 %1015
    %v1017 = vsel %vm966, %v357, 0.0
    %v1018 = vsel %vm966, %v358, 0.0
    %v1019 = vadd.f32 %v1017, %v1018
    %1020 = vadd.xlane.f32.xlu0 %v1019
    %v1021 = vpop.xlane.xlu0 %1020
    %v1022 = vsel %vm966, %v360, 0.0
    %v1023 = vsel %vm966, %v361, 0.0
    %v1024 = vadd.f32 %v1022, %v1023
    %1025 = vadd.xlane.f32.xlu0 %v1024
    %v1026 = vpop.xlane.xlu0 %1025
    %v1027 = vsel %vm966, %v363, 0.0
    %v1028 = vsel %vm966, %v364, 0.0
    %v1029 = vadd.f32 %v1027, %v1028
    %1030 = vadd.xlane.f32.xlu0 %v1029
    %v1031 = vpop.xlane.xlu0 %1030
    %v1032 = vsel %vm966, %v366, 0.0
    %v1033 = vsel %vm966, %v367, 0.0
    %v1034 = vadd.f32 %v1032, %v1033
    %1035 = vadd.xlane.f32.xlu0 %v1034
    %v1036 = vpop.xlane.xlu0 %1035
    %v1037 = vsel %vm966, %v369, 0.0
    %v1038 = vsel %vm966, %v370, 0.0
    %v1039 = vadd.f32 %v1037, %v1038
    %1040 = vadd.xlane.f32.xlu0 %v1039
    %v1041 = vpop.xlane.xlu0 %1040
    %v1042 = vsel %vm966, %v372, 0.0
    %v1043 = vsel %vm966, %v373, 0.0
    %v1044 = vadd.f32 %v1042, %v1043
    %1045 = vadd.xlane.f32.xlu0 %v1044
    %v1046 = vpop.xlane.xlu0 %1045
    %v1047 = vsel %vm966, %v375, 0.0
    %v1048 = vsel %vm966, %v376, 0.0
    %v1049 = vadd.f32 %v1047, %v1048
    %1050 = vadd.xlane.f32.xlu0 %v1049
    %v1051 = vpop.xlane.xlu0 %1050
    %v1052 = vsel %vm966, %v378, 0.0
    %v1053 = vsel %vm966, %v379, 0.0
    %v1054 = vadd.f32 %v1052, %v1053
    %1055 = vadd.xlane.f32.xlu0 %v1054
    %v1056 = vpop.xlane.xlu0 %1055
    %v1057 = vsel %vm966, %v381, 0.0
    %v1058 = vsel %vm966, %v382, 0.0
    %v1059 = vadd.f32 %v1057, %v1058
    %1060 = vadd.xlane.f32.xlu0 %v1059
    %v1061 = vpop.xlane.xlu0 %1060
    %v1062 = vsel %vm966, %v384, 0.0
    %v1063 = vsel %vm966, %v385, 0.0
    %v1064 = vadd.f32 %v1062, %v1063
    %1065 = vadd.xlane.f32.xlu0 %v1064
    %v1066 = vpop.xlane.xlu0 %1065
    %v1067 = vsel %vm966, %v387, 0.0
    %v1068 = vsel %vm966, %v388, 0.0
    %v1069 = vadd.f32 %v1067, %v1068
    %1070 = vadd.xlane.f32.xlu0 %v1069
    %v1071 = vpop.xlane.xlu0 %1070
    %v1072 = vsel %vm966, %v390, 0.0
    %v1073 = vsel %vm966, %v391, 0.0
    %v1074 = vadd.f32 %v1072, %v1073
    %1075 = vadd.xlane.f32.xlu0 %v1074
    %v1076 = vpop.xlane.xlu0 %1075
    %v1077 = vsel %vm966, %v393, 0.0
    %v1078 = vsel %vm966, %v394, 0.0
    %v1079 = vadd.f32 %v1077, %v1078
    %1080 = vadd.xlane.f32.xlu0 %v1079
    %v1081 = vpop.xlane.xlu0 %1080
    %v1082 = vsel %vm966, %v396, 0.0
    %v1083 = vsel %vm966, %v397, 0.0
    %v1084 = vadd.f32 %v1082, %v1083
    %1085 = vadd.xlane.f32.xlu0 %v1084
    %v1086 = vpop.xlane.xlu0 %1085
    %v1087 = vsel %vm966, %v399, 0.0
    %v1088 = vsel %vm966, %v400, 0.0
    %v1089 = vadd.f32 %v1087, %v1088
    %1090 = vadd.xlane.f32.xlu0 %v1089
    %v1091 = vpop.xlane.xlu0 %1090
    %v1092 = vsel %vm966, %v402, 0.0
    %v1093 = vsel %vm966, %v403, 0.0
    %v1094 = vadd.f32 %v1092, %v1093
    %1095 = vadd.xlane.f32.xlu0 %v1094
    %v1096 = vpop.xlane.xlu0 %1095
    %v1097 = vsel %vm966, %v405, 0.0
    %v1098 = vsel %vm966, %v406, 0.0
    %v1099 = vadd.f32 %v1097, %v1098
    %1100 = vadd.xlane.f32.xlu0 %v1099
    %v1101 = vpop.xlane.xlu0 %1100
    %v1102 = vsel %vm966, %v408, 0.0
    %v1103 = vsel %vm966, %v409, 0.0
    %v1104 = vadd.f32 %v1102, %v1103
    %1105 = vadd.xlane.f32.xlu0 %v1104
    %v1106 = vpop.xlane.xlu0 %1105
    %v1107 = vsel %vm966, %v411, 0.0
    %v1108 = vsel %vm966, %v412, 0.0
    %v1109 = vadd.f32 %v1107, %v1108
    %1110 = vadd.xlane.f32.xlu0 %v1109
    %v1111 = vpop.xlane.xlu0 %1110
    %v1112 = vsel %vm966, %v414, 0.0
    %v1113 = vsel %vm966, %v415, 0.0
    %v1114 = vadd.f32 %v1112, %v1113
    %1115 = vadd.xlane.f32.xlu0 %v1114
    %v1116 = vpop.xlane.xlu0 %1115
    %v1117 = vsel %vm966, %v417, 0.0
    %v1118 = vsel %vm966, %v418, 0.0
    %v1119 = vadd.f32 %v1117, %v1118
    %1120 = vadd.xlane.f32.xlu0 %v1119
    %v1121 = vpop.xlane.xlu0 %1120
    %v1122 = vsel %vm966, %v420, 0.0
    %v1123 = vsel %vm966, %v421, 0.0
    %v1124 = vadd.f32 %v1122, %v1123
    %1125 = vadd.xlane.f32.xlu0 %v1124
    %v1126 = vpop.xlane.xlu0 %1125
    %v1127 = vsel %vm966, %v423, 0.0
    %v1128 = vsel %vm966, %v424, 0.0
    %v1129 = vadd.f32 %v1127, %v1128
    %1130 = vadd.xlane.f32.xlu0 %v1129
    %v1131 = vpop.xlane.xlu0 %1130
    %v1132 = vsel %vm966, %v426, 0.0
    %v1133 = vsel %vm966, %v427, 0.0
    %v1134 = vadd.f32 %v1132, %v1133
    %1135 = vadd.xlane.f32.xlu0 %v1134
    %v1136 = vpop.xlane.xlu0 %1135
    %v1137 = vsel %vm966, %v429, 0.0
    %v1138 = vsel %vm966, %v430, 0.0
    %v1139 = vadd.f32 %v1137, %v1138
    %1140 = vadd.xlane.f32.xlu0 %v1139
    %v1141 = vpop.xlane.xlu0 %1140
    %v1142 = vsel %vm966, %v432, 0.0
    %v1143 = vsel %vm966, %v433, 0.0
    %v1144 = vadd.f32 %v1142, %v1143
    %1145 = vadd.xlane.f32.xlu0 %v1144
    %v1146 = vpop.xlane.xlu0 %1145
    %v1147 = vsel %vm966, %v435, 0.0
    %v1148 = vsel %vm966, %v436, 0.0
    %v1149 = vadd.f32 %v1147, %v1148
    %1150 = vadd.xlane.f32.xlu0 %v1149
    %v1151 = vpop.xlane.xlu0 %1150
    %v1152 = vsel %vm966, %v438, 0.0
    %v1153 = vsel %vm966, %v439, 0.0
    %v1154 = vadd.f32 %v1152, %v1153
    %1155 = vadd.xlane.f32.xlu0 %v1154
    %v1156 = vpop.xlane.xlu0 %1155
    %v1157 = vsel %vm966, %v441, 0.0
    %v1158 = vsel %vm966, %v442, 0.0
    %v1159 = vadd.f32 %v1157, %v1158
    %1160 = vadd.xlane.f32.xlu0 %v1159
    %v1161 = vpop.xlane.xlu0 %1160
    %v1162 = vsel %vm966, %v444, 0.0
    %v1163 = vsel %vm966, %v445, 0.0
    %v1164 = vadd.f32 %v1162, %v1163
    %1165 = vadd.xlane.f32.xlu0 %v1164
    %v1166 = vpop.xlane.xlu0 %1165
    %v1167 = vsel %vm966, %v447, 0.0
    %v1168 = vsel %vm966, %v448, 0.0
    %v1169 = vadd.f32 %v1167, %v1168
    %1170 = vadd.xlane.f32.xlu0 %v1169
    %v1171 = vpop.xlane.xlu0 %1170
    %v1172 = vsel %vm966, %v450, 0.0
    %v1173 = vsel %vm966, %v451, 0.0
    %v1174 = vadd.f32 %v1172, %v1173
    %1175 = vadd.xlane.f32.xlu0 %v1174
    %v1176 = vpop.xlane.xlu0 %1175
    %v1177 = vsel %vm966, %v453, 0.0
    %v1178 = vsel %vm966, %v454, 0.0
    %v1179 = vadd.f32 %v1177, %v1178
    %1180 = vadd.xlane.f32.xlu0 %v1179
    %v1181 = vpop.xlane.xlu0 %1180
    %v1182 = vsel %vm966, %v456, 0.0
    %v1183 = vsel %vm966, %v457, 0.0
    %v1184 = vadd.f32 %v1182, %v1183
    %1185 = vadd.xlane.f32.xlu0 %v1184
    %v1186 = vpop.xlane.xlu0 %1185
    %v1187 = vsel %vm966, %v459, 0.0
    %v1188 = vsel %vm966, %v460, 0.0
    %v1189 = vadd.f32 %v1187, %v1188
    %1190 = vadd.xlane.f32.xlu0 %v1189
    %v1191 = vpop.xlane.xlu0 %1190
    %v1192 = vsel %vm966, %v462, 0.0
    %v1193 = vsel %vm966, %v463, 0.0
    %v1194 = vadd.f32 %v1192, %v1193
    %1195 = vadd.xlane.f32.xlu0 %v1194
    %v1196 = vpop.xlane.xlu0 %1195
    %v1197 = vsel %vm966, %v465, 0.0
    %v1198 = vsel %vm966, %v466, 0.0
    %v1199 = vadd.f32 %v1197, %v1198
    %1200 = vadd.xlane.f32.xlu0 %v1199
    %v1201 = vpop.xlane.xlu0 %1200
    %v1202 = vsel %vm966, %v468, 0.0
    %v1203 = vsel %vm966, %v469, 0.0
    %v1204 = vadd.f32 %v1202, %v1203
    %1205 = vadd.xlane.f32.xlu0 %v1204
    %v1206 = vpop.xlane.xlu0 %1205
    %v1207 = vsel %vm966, %v471, 0.0
    %v1208 = vsel %vm966, %v472, 0.0
    %v1209 = vadd.f32 %v1207, %v1208
    %1210 = vadd.xlane.f32.xlu0 %v1209
    %v1211 = vpop.xlane.xlu0 %1210
    %v1212 = vsel %vm966, %v474, 0.0
    %v1213 = vsel %vm966, %v475, 0.0
    %v1214 = vadd.f32 %v1212, %v1213
    %1215 = vadd.xlane.f32.xlu0 %v1214
    %v1216 = vpop.xlane.xlu0 %1215
    %v1217 = vsel %vm966, %v477, 0.0
    %v1218 = vsel %vm966, %v478, 0.0
    %v1219 = vadd.f32 %v1217, %v1218
    %1220 = vadd.xlane.f32.xlu0 %v1219
    %v1221 = vpop.xlane.xlu0 %1220
    %v1222 = vsel %vm966, %v480, 0.0
    %v1223 = vsel %vm966, %v481, 0.0
    %v1224 = vadd.f32 %v1222, %v1223
    %1225 = vadd.xlane.f32.xlu0 %v1224
    %v1226 = vpop.xlane.xlu0 %1225
    %v1227 = vsel %vm966, %v483, 0.0
    %v1228 = vsel %vm966, %v484, 0.0
    %v1229 = vadd.f32 %v1227, %v1228
    %1230 = vadd.xlane.f32.xlu0 %v1229
    %v1231 = vpop.xlane.xlu0 %1230
    %v1232 = vsel %vm966, %v486, 0.0
    %v1233 = vsel %vm966, %v487, 0.0
    %v1234 = vadd.f32 %v1232, %v1233
    %1235 = vadd.xlane.f32.xlu0 %v1234
    %v1236 = vpop.xlane.xlu0 %1235
    %v1237 = vsel %vm966, %v489, 0.0
    %v1238 = vsel %vm966, %v490, 0.0
    %v1239 = vadd.f32 %v1237, %v1238
    %1240 = vadd.xlane.f32.xlu0 %v1239
    %v1241 = vpop.xlane.xlu0 %1240
    %v1242 = vsel %vm966, %v492, 0.0
    %v1243 = vsel %vm966, %v493, 0.0
    %v1244 = vadd.f32 %v1242, %v1243
    %1245 = vadd.xlane.f32.xlu0 %v1244
    %v1246 = vpop.xlane.xlu0 %1245
    %v1247 = vsel %vm966, %v495, 0.0
    %v1248 = vsel %vm966, %v496, 0.0
    %v1249 = vadd.f32 %v1247, %v1248
    %1250 = vadd.xlane.f32.xlu0 %v1249
    %v1251 = vpop.xlane.xlu0 %1250
    %v1252 = vsel %vm966, %v498, 0.0
    %v1253 = vsel %vm966, %v499, 0.0
    %v1254 = vadd.f32 %v1252, %v1253
    %1255 = vadd.xlane.f32.xlu0 %v1254
    %v1256 = vpop.xlane.xlu0 %1255
    %v1257 = vsel %vm966, %v501, 0.0
    %v1258 = vsel %vm966, %v502, 0.0
    %v1259 = vadd.f32 %v1257, %v1258
    %1260 = vadd.xlane.f32.xlu0 %v1259
    %v1261 = vpop.xlane.xlu0 %1260
    %v1262 = vsel %vm966, %v504, 0.0
    %v1263 = vsel %vm966, %v505, 0.0
    %v1264 = vadd.f32 %v1262, %v1263
    %1265 = vadd.xlane.f32.xlu0 %v1264
    %v1266 = vpop.xlane.xlu0 %1265
    %v1267 = vsel %vm966, %v507, 0.0
    %v1268 = vsel %vm966, %v508, 0.0
    %v1269 = vadd.f32 %v1267, %v1268
    %1270 = vadd.xlane.f32.xlu0 %v1269
    %v1271 = vpop.xlane.xlu0 %1270
    %v1272 = vsel %vm966, %v510, 0.0
    %v1273 = vsel %vm966, %v511, 0.0
    %v1274 = vadd.f32 %v1272, %v1273
    %1275 = vadd.xlane.f32.xlu0 %v1274
    %v1276 = vpop.xlane.xlu0 %1275
    %v1277 = vsel %vm966, %v513, 0.0
    %v1278 = vsel %vm966, %v514, 0.0
    %v1279 = vadd.f32 %v1277, %v1278
    %1280 = vadd.xlane.f32.xlu0 %v1279
    %v1281 = vpop.xlane.xlu0 %1280
    %v1282 = vsel %vm966, %v516, 0.0
    %v1283 = vsel %vm966, %v517, 0.0
    %v1284 = vadd.f32 %v1282, %v1283
    %1285 = vadd.xlane.f32.xlu0 %v1284
    %v1286 = vpop.xlane.xlu0 %1285
    %v1287 = vsel %vm966, %v519, 0.0
    %v1288 = vsel %vm966, %v520, 0.0
    %v1289 = vadd.f32 %v1287, %v1288
    %1290 = vadd.xlane.f32.xlu0 %v1289
    %v1291 = vpop.xlane.xlu0 %1290
    %v1292 = vsel %vm966, %v522, 0.0
    %v1293 = vsel %vm966, %v523, 0.0
    %v1294 = vadd.f32 %v1292, %v1293
    %1295 = vadd.xlane.f32.xlu0 %v1294
    %v1296 = vpop.xlane.xlu0 %1295
    %v1297 = vsel %vm966, %v525, 0.0
    %v1298 = vsel %vm966, %v526, 0.0
    %v1299 = vadd.f32 %v1297, %v1298
    %1300 = vadd.xlane.f32.xlu0 %v1299
    %v1301 = vpop.xlane.xlu0 %1300
    %v1302 = vsel %vm966, %v528, 0.0
    %v1303 = vsel %vm966, %v529, 0.0
    %v1304 = vadd.f32 %v1302, %v1303
    %1305 = vadd.xlane.f32.xlu0 %v1304
    %v1306 = vpop.xlane.xlu0 %1305
    %v1307 = vsel %vm966, %v531, 0.0
    %v1308 = vsel %vm966, %v532, 0.0
    %v1309 = vadd.f32 %v1307, %v1308
    %1310 = vadd.xlane.f32.xlu0 %v1309
    %v1311 = vpop.xlane.xlu0 %1310
    %v1312 = vsel %vm966, %v534, 0.0
    %v1313 = vsel %vm966, %v535, 0.0
    %v1314 = vadd.f32 %v1312, %v1313
    %1315 = vadd.xlane.f32.xlu0 %v1314
    %v1316 = vpop.xlane.xlu0 %1315
    %v1317 = vsel %vm966, %v537, 0.0
    %v1318 = vsel %vm966, %v538, 0.0
    %v1319 = vadd.f32 %v1317, %v1318
    %1320 = vadd.xlane.f32.xlu0 %v1319
    %v1321 = vpop.xlane.xlu0 %1320
    %v1322 = vsel %vm966, %v540, 0.0
    %v1323 = vsel %vm966, %v541, 0.0
    %v1324 = vadd.f32 %v1322, %v1323
    %1325 = vadd.xlane.f32.xlu0 %v1324
    %v1326 = vpop.xlane.xlu0 %1325
    %v1327 = vsel %vm966, %v543, 0.0
    %v1328 = vsel %vm966, %v544, 0.0
    %v1329 = vadd.f32 %v1327, %v1328
    %1330 = vadd.xlane.f32.xlu0 %v1329
    %v1331 = vpop.xlane.xlu0 %1330
    %v1332 = vsel %vm966, %v546, 0.0
    %v1333 = vsel %vm966, %v547, 0.0
    %v1334 = vadd.f32 %v1332, %v1333
    %1335 = vadd.xlane.f32.xlu0 %v1334
    %v1336 = vpop.xlane.xlu0 %1335
    %v1337 = vsel %vm966, %v549, 0.0
    %v1338 = vsel %vm966, %v550, 0.0
    %v1339 = vadd.f32 %v1337, %v1338
    %1340 = vadd.xlane.f32.xlu0 %v1339
    %v1341 = vpop.xlane.xlu0 %1340
    %v1342 = vsel %vm966, %v552, 0.0
    %v1343 = vsel %vm966, %v553, 0.0
    %v1344 = vadd.f32 %v1342, %v1343
    %1345 = vadd.xlane.f32.xlu0 %v1344
    %v1346 = vpop.xlane.xlu0 %1345
    %v1347 = vsel %vm966, %v555, 0.0
    %v1348 = vsel %vm966, %v556, 0.0
    %v1349 = vadd.f32 %v1347, %v1348
    %1350 = vadd.xlane.f32.xlu0 %v1349
    %v1351 = vpop.xlane.xlu0 %1350
    %v1352 = vsel %vm966, %v558, 0.0
    %v1353 = vsel %vm966, %v559, 0.0
    %v1354 = vadd.f32 %v1352, %v1353
    %1355 = vadd.xlane.f32.xlu0 %v1354
    %v1356 = vpop.xlane.xlu0 %1355
    %v1357 = vsel %vm966, %v561, 0.0
    %v1358 = vsel %vm966, %v562, 0.0
    %v1359 = vadd.f32 %v1357, %v1358
    %1360 = vadd.xlane.f32.xlu0 %v1359
    %v1361 = vpop.xlane.xlu0 %1360
    %v1362 = vsel %vm966, %v564, 0.0
    %v1363 = vsel %vm966, %v565, 0.0
    %v1364 = vadd.f32 %v1362, %v1363
    %1365 = vadd.xlane.f32.xlu0 %v1364
    %v1366 = vpop.xlane.xlu0 %1365
    %v1367 = vsel %vm966, %v567, 0.0
    %v1368 = vsel %vm966, %v568, 0.0
    %v1369 = vadd.f32 %v1367, %v1368
    %1370 = vadd.xlane.f32.xlu0 %v1369
    %v1371 = vpop.xlane.xlu0 %1370
    %v1372 = vsel %vm966, %v570, 0.0
    %v1373 = vsel %vm966, %v571, 0.0
    %v1374 = vadd.f32 %v1372, %v1373
    %1375 = vadd.xlane.f32.xlu0 %v1374
    %v1376 = vpop.xlane.xlu0 %1375
    %v1377 = vsel %vm966, %v573, 0.0
    %v1378 = vsel %vm966, %v574, 0.0
    %v1379 = vadd.f32 %v1377, %v1378
    %1380 = vadd.xlane.f32.xlu0 %v1379
    %v1381 = vpop.xlane.xlu0 %1380
    %v1382 = vsel %vm966, %v576, 0.0
    %v1383 = vsel %vm966, %v577, 0.0
    %v1384 = vadd.f32 %v1382, %v1383
    %1385 = vadd.xlane.f32.xlu0 %v1384
    %v1386 = vpop.xlane.xlu0 %1385
    %v1387 = vsel %vm966, %v579, 0.0
    %v1388 = vsel %vm966, %v580, 0.0
    %v1389 = vadd.f32 %v1387, %v1388
    %1390 = vadd.xlane.f32.xlu0 %v1389
    %v1391 = vpop.xlane.xlu0 %1390
    %v1392 = vsel %vm966, %v582, 0.0
    %v1393 = vsel %vm966, %v583, 0.0
    %v1394 = vadd.f32 %v1392, %v1393
    %1395 = vadd.xlane.f32.xlu0 %v1394
    %v1396 = vpop.xlane.xlu0 %1395
    %v1397 = vsel %vm966, %v585, 0.0
    %v1398 = vsel %vm966, %v586, 0.0
    %v1399 = vadd.f32 %v1397, %v1398
    %1400 = vadd.xlane.f32.xlu0 %v1399
    %v1401 = vpop.xlane.xlu0 %1400
    %v1402 = vsel %vm966, %v588, 0.0
    %v1403 = vsel %vm966, %v589, 0.0
    %v1404 = vadd.f32 %v1402, %v1403
    %1405 = vadd.xlane.f32.xlu0 %v1404
    %v1406 = vpop.xlane.xlu0 %1405
    %v1407 = vsel %vm966, %v591, 0.0
    %v1408 = vsel %vm966, %v592, 0.0
    %v1409 = vadd.f32 %v1407, %v1408
    %1410 = vadd.xlane.f32.xlu0 %v1409
    %v1411 = vpop.xlane.xlu0 %1410
    %v1412 = vsel %vm966, %v594, 0.0
    %v1413 = vsel %vm966, %v595, 0.0
    %v1414 = vadd.f32 %v1412, %v1413
    %1415 = vadd.xlane.f32.xlu0 %v1414
    %v1416 = vpop.xlane.xlu0 %1415
    %v1417 = vsel %vm966, %v597, 0.0
    %v1418 = vsel %vm966, %v598, 0.0
    %v1419 = vadd.f32 %v1417, %v1418
    %1420 = vadd.xlane.f32.xlu0 %v1419
    %v1421 = vpop.xlane.xlu0 %1420
    %v1422 = vsel %vm966, %v600, 0.0
    %v1423 = vsel %vm966, %v601, 0.0
    %v1424 = vadd.f32 %v1422, %v1423
    %1425 = vadd.xlane.f32.xlu0 %v1424
    %v1426 = vpop.xlane.xlu0 %1425
    %v1427 = vsel %vm966, %v603, 0.0
    %v1428 = vsel %vm966, %v604, 0.0
    %v1429 = vadd.f32 %v1427, %v1428
    %1430 = vadd.xlane.f32.xlu0 %v1429
    %v1431 = vpop.xlane.xlu0 %1430
    %v1432 = vsel %vm966, %v606, 0.0
    %v1433 = vsel %vm966, %v607, 0.0
    %v1434 = vadd.f32 %v1432, %v1433
    %1435 = vadd.xlane.f32.xlu0 %v1434
    %v1436 = vpop.xlane.xlu0 %1435
    %v1437 = vsel %vm966, %v609, 0.0
    %v1438 = vsel %vm966, %v610, 0.0
    %v1439 = vadd.f32 %v1437, %v1438
    %1440 = vadd.xlane.f32.xlu0 %v1439
    %v1441 = vpop.xlane.xlu0 %1440
    %v1442 = vsel %vm966, %v612, 0.0
    %v1443 = vsel %vm966, %v613, 0.0
    %v1444 = vadd.f32 %v1442, %v1443
    %1445 = vadd.xlane.f32.xlu0 %v1444
    %v1446 = vpop.xlane.xlu0 %1445
    %v1447 = vsel %vm966, %v615, 0.0
    %v1448 = vsel %vm966, %v616, 0.0
    %v1449 = vadd.f32 %v1447, %v1448
    %1450 = vadd.xlane.f32.xlu0 %v1449
    %v1451 = vpop.xlane.xlu0 %1450
    %v1452 = vsel %vm966, %v618, 0.0
    %v1453 = vsel %vm966, %v619, 0.0
    %v1454 = vadd.f32 %v1452, %v1453
    %1455 = vadd.xlane.f32.xlu0 %v1454
    %v1456 = vpop.xlane.xlu0 %1455
    %v1457 = vsel %vm966, %v621, 0.0
    %v1458 = vsel %vm966, %v622, 0.0
    %v1459 = vadd.f32 %v1457, %v1458
    %1460 = vadd.xlane.f32.xlu0 %v1459
    %v1461 = vpop.xlane.xlu0 %1460
    %v1462 = vsel %vm966, %v624, 0.0
    %v1463 = vsel %vm966, %v625, 0.0
    %v1464 = vadd.f32 %v1462, %v1463
    %1465 = vadd.xlane.f32.xlu0 %v1464
    %v1466 = vpop.xlane.xlu0 %1465
    %v1467 = vsel %vm966, %v627, 0.0
    %v1468 = vsel %vm966, %v628, 0.0
    %v1469 = vadd.f32 %v1467, %v1468
    %1470 = vadd.xlane.f32.xlu0 %v1469
    %v1471 = vpop.xlane.xlu0 %1470
    %v1472 = vsel %vm966, %v630, 0.0
    %v1473 = vsel %vm966, %v631, 0.0
    %v1474 = vadd.f32 %v1472, %v1473
    %1475 = vadd.xlane.f32.xlu0 %v1474
    %v1476 = vpop.xlane.xlu0 %1475
    %v1477 = vsel %vm966, %v633, 0.0
    %v1478 = vsel %vm966, %v634, 0.0
    %v1479 = vadd.f32 %v1477, %v1478
    %1480 = vadd.xlane.f32.xlu0 %v1479
    %v1481 = vpop.xlane.xlu0 %1480
    %v1482 = vsel %vm966, %v636, 0.0
    %v1483 = vsel %vm966, %v637, 0.0
    %v1484 = vadd.f32 %v1482, %v1483
    %1485 = vadd.xlane.f32.xlu0 %v1484
    %v1486 = vpop.xlane.xlu0 %1485
    %v1487 = vsel %vm966, %v639, 0.0
    %v1488 = vsel %vm966, %v640, 0.0
    %v1489 = vadd.f32 %v1487, %v1488
    %1490 = vadd.xlane.f32.xlu0 %v1489
    %v1491 = vpop.xlane.xlu0 %1490
    %v1492 = vsel %vm966, %v642, 0.0
    %v1493 = vsel %vm966, %v643, 0.0
    %v1494 = vadd.f32 %v1492, %v1493
    %1495 = vadd.xlane.f32.xlu0 %v1494
    %v1496 = vpop.xlane.xlu0 %1495
    %v1497 = vsel %vm966, %v645, 0.0
    %v1498 = vsel %vm966, %v646, 0.0
    %v1499 = vadd.f32 %v1497, %v1498
    %1500 = vadd.xlane.f32.xlu0 %v1499
    %v1501 = vpop.xlane.xlu0 %1500
    %v1502 = vsel %vm966, %v648, 0.0
    %v1503 = vsel %vm966, %v649, 0.0
    %v1504 = vadd.f32 %v1502, %v1503
    %1505 = vadd.xlane.f32.xlu0 %v1504
    %v1506 = vpop.xlane.xlu0 %1505
    %v1507 = vsel %vm966, %v651, 0.0
    %v1508 = vsel %vm966, %v652, 0.0
    %v1509 = vadd.f32 %v1507, %v1508
    %1510 = vadd.xlane.f32.xlu0 %v1509
    %v1511 = vpop.xlane.xlu0 %1510
    %v1512 = vsel %vm966, %v654, 0.0
    %v1513 = vsel %vm966, %v655, 0.0
    %v1514 = vadd.f32 %v1512, %v1513
    %1515 = vadd.xlane.f32.xlu0 %v1514
    %v1516 = vpop.xlane.xlu0 %1515
    %v1517 = vsel %vm966, %v657, 0.0
    %v1518 = vsel %vm966, %v658, 0.0
    %v1519 = vadd.f32 %v1517, %v1518
    %1520 = vadd.xlane.f32.xlu0 %v1519
    %v1521 = vpop.xlane.xlu0 %1520
    %v1522 = vsel %vm966, %v660, 0.0
    %v1523 = vsel %vm966, %v661, 0.0
    %v1524 = vadd.f32 %v1522, %v1523
    %1525 = vadd.xlane.f32.xlu0 %v1524
    %v1526 = vpop.xlane.xlu0 %1525
    %v1527 = vsel %vm966, %v663, 0.0
    %v1528 = vsel %vm966, %v664, 0.0
    %v1529 = vadd.f32 %v1527, %v1528
    %1530 = vadd.xlane.f32.xlu0 %v1529
    %v1531 = vpop.xlane.xlu0 %1530
    %v1532 = vsel %vm966, %v666, 0.0
    %v1533 = vsel %vm966, %v667, 0.0
    %v1534 = vadd.f32 %v1532, %v1533
    %1535 = vadd.xlane.f32.xlu0 %v1534
    %v1536 = vpop.xlane.xlu0 %1535
    %v1537 = vsel %vm966, %v669, 0.0
    %v1538 = vsel %vm966, %v670, 0.0
    %v1539 = vadd.f32 %v1537, %v1538
    %1540 = vadd.xlane.f32.xlu0 %v1539
    %v1541 = vpop.xlane.xlu0 %1540
    %v1542 = vsel %vm966, %v672, 0.0
    %v1543 = vsel %vm966, %v673, 0.0
    %v1544 = vadd.f32 %v1542, %v1543
    %1545 = vadd.xlane.f32.xlu0 %v1544
    %v1546 = vpop.xlane.xlu0 %1545
    %v1547 = vsel %vm966, %v675, 0.0
    %v1548 = vsel %vm966, %v676, 0.0
    %v1549 = vadd.f32 %v1547, %v1548
    %1550 = vadd.xlane.f32.xlu0 %v1549
    %v1551 = vpop.xlane.xlu0 %1550
    %v1552 = vsel %vm966, %v678, 0.0
    %v1553 = vsel %vm966, %v679, 0.0
    %v1554 = vadd.f32 %v1552, %v1553
    %1555 = vadd.xlane.f32.xlu0 %v1554
    %v1556 = vpop.xlane.xlu0 %1555
    %v1557 = vsel %vm966, %v681, 0.0
    %v1558 = vsel %vm966, %v682, 0.0
    %v1559 = vadd.f32 %v1557, %v1558
    %1560 = vadd.xlane.f32.xlu0 %v1559
    %v1561 = vpop.xlane.xlu0 %1560
    %v1562 = vsel %vm966, %v684, 0.0
    %v1563 = vsel %vm966, %v685, 0.0
    %v1564 = vadd.f32 %v1562, %v1563
    %1565 = vadd.xlane.f32.xlu0 %v1564
    %v1566 = vpop.xlane.xlu0 %1565
    %v1567 = vsel %vm966, %v687, 0.0
    %v1568 = vsel %vm966, %v688, 0.0
    %v1569 = vadd.f32 %v1567, %v1568
    %1570 = vadd.xlane.f32.xlu0 %v1569
    %v1571 = vpop.xlane.xlu0 %1570
    %v1572 = vsel %vm966, %v690, 0.0
    %v1573 = vsel %vm966, %v691, 0.0
    %v1574 = vadd.f32 %v1572, %v1573
    %1575 = vadd.xlane.f32.xlu0 %v1574
    %v1576 = vpop.xlane.xlu0 %1575
    %v1577 = vsel %vm966, %v693, 0.0
    %v1578 = vsel %vm966, %v694, 0.0
    %v1579 = vadd.f32 %v1577, %v1578
    %1580 = vadd.xlane.f32.xlu0 %v1579
    %v1581 = vpop.xlane.xlu0 %1580
    %v1582 = vsel %vm966, %v696, 0.0
    %v1583 = vsel %vm966, %v697, 0.0
    %v1584 = vadd.f32 %v1582, %v1583
    %1585 = vadd.xlane.f32.xlu0 %v1584
    %v1586 = vpop.xlane.xlu0 %1585
    %v1587 = vsel %vm966, %v699, 0.0
    %v1588 = vsel %vm966, %v700, 0.0
    %v1589 = vadd.f32 %v1587, %v1588
    %1590 = vadd.xlane.f32.xlu0 %v1589
    %v1591 = vpop.xlane.xlu0 %1590
    %v1592 = vsel %vm966, %v702, 0.0
    %v1593 = vsel %vm966, %v703, 0.0
    %v1594 = vadd.f32 %v1592, %v1593
    %1595 = vadd.xlane.f32.xlu0 %v1594
    %v1596 = vpop.xlane.xlu0 %1595
    %v1597 = vsel %vm966, %v705, 0.0
    %v1598 = vsel %vm966, %v706, 0.0
    %v1599 = vadd.f32 %v1597, %v1598
    %1600 = vadd.xlane.f32.xlu0 %v1599
    %v1601 = vpop.xlane.xlu0 %1600
    %v1602 = vsel %vm966, %v708, 0.0
    %v1603 = vsel %vm966, %v709, 0.0
    %v1604 = vadd.f32 %v1602, %v1603
    %1605 = vadd.xlane.f32.xlu0 %v1604
    %v1606 = vpop.xlane.xlu0 %1605
    %v1607 = vrcp.pop 256.0
    %v1608 = vmul.f32 256.0, %v1607
    %v1609 = vsub.f32 1.0, %v1608
    %v1610 = vmul.f32 %v1607, %v1609
    %v1611 = vadd.f32 %v1607, %v1610
    %vm1612 = vweird.f32 %v1607
    %v1613 = vsel %vm1612, %v1607, %v1611
    %v1614 = vmul.f32 %v971, %v1613
    %v1615 = vmul.f32 %v976, %v1613
    %v1616 = vmul.f32 %v981, %v1613
    %v1617 = vmul.f32 %v986, %v1613
    %v1618 = vmul.f32 %v991, %v1613
    %v1619 = vmul.f32 %v996, %v1613
    %v1620 = vmul.f32 %v1001, %v1613
    %v1621 = vmul.f32 %v1006, %v1613
    %v1622 = vmul.f32 %v1011, %v1613
    %v1623 = vmul.f32 %v1016, %v1613
    %v1624 = vmul.f32 %v1021, %v1613
    %v1625 = vmul.f32 %v1026, %v1613
    %v1626 = vmul.f32 %v1031, %v1613
    %v1627 = vmul.f32 %v1036, %v1613
    %v1628 = vmul.f32 %v1041, %v1613
    %v1629 = vmul.f32 %v1046, %v1613
    %v1630 = vmul.f32 %v1051, %v1613
    %v1631 = vmul.f32 %v1056, %v1613
    %v1632 = vmul.f32 %v1061, %v1613
    %v1633 = vmul.f32 %v1066, %v1613
    %v1634 = vmul.f32 %v1071, %v1613
    %v1635 = vmul.f32 %v1076, %v1613
    %v1636 = vmul.f32 %v1081, %v1613
    %v1637 = vmul.f32 %v1086, %v1613
    %v1638 = vmul.f32 %v1091, %v1613
    %v1639 = vmul.f32 %v1096, %v1613
    %v1640 = vmul.f32 %v1101, %v1613
    %v1641 = vmul.f32 %v1106, %v1613
    %v1642 = vmul.f32 %v1111, %v1613
    %v1643 = vmul.f32 %v1116, %v1613
    %v1644 = vmul.f32 %v1121, %v1613
    %v1645 = vmul.f32 %v1126, %v1613
    %v1646 = vmul.f32 %v1131, %v1613
    %v1647 = vmul.f32 %v1136, %v1613
    %v1648 = vmul.f32 %v1141, %v1613
    %v1649 = vmul.f32 %v1146, %v1613
    %v1650 = vmul.f32 %v1151, %v1613
    %v1651 = vmul.f32 %v1156, %v1613
    %v1652 = vmul.f32 %v1161, %v1613
    %v1653 = vmul.f32 %v1166, %v1613
    %v1654 = vmul.f32 %v1171, %v1613
    %v1655 = vmul.f32 %v1176, %v1613
    %v1656 = vmul.f32 %v1181, %v1613
    %v1657 = vmul.f32 %v1186, %v1613
    %v1658 = vmul.f32 %v1191, %v1613
    %v1659 = vmul.f32 %v1196, %v1613
    %v1660 = vmul.f32 %v1201, %v1613
    %v1661 = vmul.f32 %v1206, %v1613
    %v1662 = vmul.f32 %v1211, %v1613
    %v1663 = vmul.f32 %v1216, %v1613
    %v1664 = vmul.f32 %v1221, %v1613
    %v1665 = vmul.f32 %v1226, %v1613
    %v1666 = vmul.f32 %v1231, %v1613
    %v1667 = vmul.f32 %v1236, %v1613
    %v1668 = vmul.f32 %v1241, %v1613
    %v1669 = vmul.f32 %v1246, %v1613
    %v1670 = vmul.f32 %v1251, %v1613
    %v1671 = vmul.f32 %v1256, %v1613
    %v1672 = vmul.f32 %v1261, %v1613
    %v1673 = vmul.f32 %v1266, %v1613
    %v1674 = vmul.f32 %v1271, %v1613
    %v1675 = vmul.f32 %v1276, %v1613
    %v1676 = vmul.f32 %v1281, %v1613
    %v1677 = vmul.f32 %v1286, %v1613
    %v1678 = vmul.f32 %v1291, %v1613
    %v1679 = vmul.f32 %v1296, %v1613
    %v1680 = vmul.f32 %v1301, %v1613
    %v1681 = vmul.f32 %v1306, %v1613
    %v1682 = vmul.f32 %v1311, %v1613
    %v1683 = vmul.f32 %v1316, %v1613
    %v1684 = vmul.f32 %v1321, %v1613
    %v1685 = vmul.f32 %v1326, %v1613
    %v1686 = vmul.f32 %v1331, %v1613
    %v1687 = vmul.f32 %v1336, %v1613
    %v1688 = vmul.f32 %v1341, %v1613
    %v1689 = vmul.f32 %v1346, %v1613
    %v1690 = vmul.f32 %v1351, %v1613
    %v1691 = vmul.f32 %v1356, %v1613
    %v1692 = vmul.f32 %v1361, %v1613
    %v1693 = vmul.f32 %v1366, %v1613
    %v1694 = vmul.f32 %v1371, %v1613
    %v1695 = vmul.f32 %v1376, %v1613
    %v1696 = vmul.f32 %v1381, %v1613
    %v1697 = vmul.f32 %v1386, %v1613
    %v1698 = vmul.f32 %v1391, %v1613
    %v1699 = vmul.f32 %v1396, %v1613
    %v1700 = vmul.f32 %v1401, %v1613
    %v1701 = vmul.f32 %v1406, %v1613
    %v1702 = vmul.f32 %v1411, %v1613
    %v1703 = vmul.f32 %v1416, %v1613
    %v1704 = vmul.f32 %v1421, %v1613
    %v1705 = vmul.f32 %v1426, %v1613
    %v1706 = vmul.f32 %v1431, %v1613
    %v1707 = vmul.f32 %v1436, %v1613
    %v1708 = vmul.f32 %v1441, %v1613
    %v1709 = vmul.f32 %v1446, %v1613
    %v1710 = vmul.f32 %v1451, %v1613
    %v1711 = vmul.f32 %v1456, %v1613
    %v1712 = vmul.f32 %v1461, %v1613
    %v1713 = vmul.f32 %v1466, %v1613
    %v1714 = vmul.f32 %v1471, %v1613
    %v1715 = vmul.f32 %v1476, %v1613
    %v1716 = vmul.f32 %v1481, %v1613
    %v1717 = vmul.f32 %v1486, %v1613
    %v1718 = vmul.f32 %v1491, %v1613
    %v1719 = vmul.f32 %v1496, %v1613
    %v1720 = vmul.f32 %v1501, %v1613
    %v1721 = vmul.f32 %v1506, %v1613
    %v1722 = vmul.f32 %v1511, %v1613
    %v1723 = vmul.f32 %v1516, %v1613
    %v1724 = vmul.f32 %v1521, %v1613
    %v1725 = vmul.f32 %v1526, %v1613
    %v1726 = vmul.f32 %v1531, %v1613
    %v1727 = vmul.f32 %v1536, %v1613
    %v1728 = vmul.f32 %v1541, %v1613
    %v1729 = vmul.f32 %v1546, %v1613
    %v1730 = vmul.f32 %v1551, %v1613
    %v1731 = vmul.f32 %v1556, %v1613
    %v1732 = vmul.f32 %v1561, %v1613
    %v1733 = vmul.f32 %v1566, %v1613
    %v1734 = vmul.f32 %v1571, %v1613
    %v1735 = vmul.f32 %v1576, %v1613
    %v1736 = vmul.f32 %v1581, %v1613
    %v1737 = vmul.f32 %v1586, %v1613
    %v1738 = vmul.f32 %v1591, %v1613
    %v1739 = vmul.f32 %v1596, %v1613
    %v1740 = vmul.f32 %v1601, %v1613
    %v1741 = vmul.f32 %v1606, %v1613
    %v1742 = vpack.c.bf16 %v1614, %v1614
    %v1743 = vpack.c.bf16 %v1615, %v1615
    %v1744 = vpack.c.bf16 %v1616, %v1616
    %v1745 = vpack.c.bf16 %v1617, %v1617
    %v1746 = vpack.c.bf16 %v1618, %v1618
    %v1747 = vpack.c.bf16 %v1619, %v1619
    %v1748 = vpack.c.bf16 %v1620, %v1620
    %v1749 = vpack.c.bf16 %v1621, %v1621
    %v1750 = vpack.c.bf16 %v1622, %v1622
    %v1751 = vpack.c.bf16 %v1623, %v1623
    %v1752 = vpack.c.bf16 %v1624, %v1624
    %v1753 = vpack.c.bf16 %v1625, %v1625
    %v1754 = vpack.c.bf16 %v1626, %v1626
    %v1755 = vpack.c.bf16 %v1627, %v1627
    %v1756 = vpack.c.bf16 %v1628, %v1628
    %v1757 = vpack.c.bf16 %v1629, %v1629
    %v1758 = vpack.c.bf16 %v1630, %v1630
    %v1759 = vpack.c.bf16 %v1631, %v1631
    %v1760 = vpack.c.bf16 %v1632, %v1632
    %v1761 = vpack.c.bf16 %v1633, %v1633
    %v1762 = vpack.c.bf16 %v1634, %v1634
    %v1763 = vpack.c.bf16 %v1635, %v1635
    %v1764 = vpack.c.bf16 %v1636, %v1636
    %v1765 = vpack.c.bf16 %v1637, %v1637
    %v1766 = vpack.c.bf16 %v1638, %v1638
    %v1767 = vpack.c.bf16 %v1639, %v1639
    %v1768 = vpack.c.bf16 %v1640, %v1640
    %v1769 = vpack.c.bf16 %v1641, %v1641
    %v1770 = vpack.c.bf16 %v1642, %v1642
    %v1771 = vpack.c.bf16 %v1643, %v1643
    %v1772 = vpack.c.bf16 %v1644, %v1644
    %v1773 = vpack.c.bf16 %v1645, %v1645
    %v1774 = vpack.c.bf16 %v1646, %v1646
    %v1775 = vpack.c.bf16 %v1647, %v1647
    %v1776 = vpack.c.bf16 %v1648, %v1648
    %v1777 = vpack.c.bf16 %v1649, %v1649
    %v1778 = vpack.c.bf16 %v1650, %v1650
    %v1779 = vpack.c.bf16 %v1651, %v1651
    %v1780 = vpack.c.bf16 %v1652, %v1652
    %v1781 = vpack.c.bf16 %v1653, %v1653
    %v1782 = vpack.c.bf16 %v1654, %v1654
    %v1783 = vpack.c.bf16 %v1655, %v1655
    %v1784 = vpack.c.bf16 %v1656, %v1656
    %v1785 = vpack.c.bf16 %v1657, %v1657
    %v1786 = vpack.c.bf16 %v1658, %v1658
    %v1787 = vpack.c.bf16 %v1659, %v1659
    %v1788 = vpack.c.bf16 %v1660, %v1660
    %v1789 = vpack.c.bf16 %v1661, %v1661
    %v1790 = vpack.c.bf16 %v1662, %v1662
    %v1791 = vpack.c.bf16 %v1663, %v1663
    %v1792 = vpack.c.bf16 %v1664, %v1664
    %v1793 = vpack.c.bf16 %v1665, %v1665
    %v1794 = vpack.c.bf16 %v1666, %v1666
    %v1795 = vpack.c.bf16 %v1667, %v1667
    %v1796 = vpack.c.bf16 %v1668, %v1668
    %v1797 = vpack.c.bf16 %v1669, %v1669
    %v1798 = vpack.c.bf16 %v1670, %v1670
    %v1799 = vpack.c.bf16 %v1671, %v1671
    %v1800 = vpack.c.bf16 %v1672, %v1672
    %v1801 = vpack.c.bf16 %v1673, %v1673
    %v1802 = vpack.c.bf16 %v1674, %v1674
    %v1803 = vpack.c.bf16 %v1675, %v1675
    %v1804 = vpack.c.bf16 %v1676, %v1676
    %v1805 = vpack.c.bf16 %v1677, %v1677
    %v1806 = vpack.c.bf16 %v1678, %v1678
    %v1807 = vpack.c.bf16 %v1679, %v1679
    %v1808 = vpack.c.bf16 %v1680, %v1680
    %v1809 = vpack.c.bf16 %v1681, %v1681
    %v1810 = vpack.c.bf16 %v1682, %v1682
    %v1811 = vpack.c.bf16 %v1683, %v1683
    %v1812 = vpack.c.bf16 %v1684, %v1684
    %v1813 = vpack.c.bf16 %v1685, %v1685
    %v1814 = vpack.c.bf16 %v1686, %v1686
    %v1815 = vpack.c.bf16 %v1687, %v1687
    %v1816 = vpack.c.bf16 %v1688, %v1688
    %v1817 = vpack.c.bf16 %v1689, %v1689
    %v1818 = vpack.c.bf16 %v1690, %v1690
    %v1819 = vpack.c.bf16 %v1691, %v1691
    %v1820 = vpack.c.bf16 %v1692, %v1692
    %v1821 = vpack.c.bf16 %v1693, %v1693
    %v1822 = vpack.c.bf16 %v1694, %v1694
    %v1823 = vpack.c.bf16 %v1695, %v1695
    %v1824 = vpack.c.bf16 %v1696, %v1696
    %v1825 = vpack.c.bf16 %v1697, %v1697
    %v1826 = vpack.c.bf16 %v1698, %v1698
    %v1827 = vpack.c.bf16 %v1699, %v1699
    %v1828 = vpack.c.bf16 %v1700, %v1700
    %v1829 = vpack.c.bf16 %v1701, %v1701
    %v1830 = vpack.c.bf16 %v1702, %v1702
    %v1831 = vpack.c.bf16 %v1703, %v1703
    %v1832 = vpack.c.bf16 %v1704, %v1704
    %v1833 = vpack.c.bf16 %v1705, %v1705
    %v1834 = vpack.c.bf16 %v1706, %v1706
    %v1835 = vpack.c.bf16 %v1707, %v1707
    %v1836 = vpack.c.bf16 %v1708, %v1708
    %v1837 = vpack.c.bf16 %v1709, %v1709
    %v1838 = vpack.c.bf16 %v1710, %v1710
    %v1839 = vpack.c.bf16 %v1711, %v1711
    %v1840 = vpack.c.bf16 %v1712, %v1712
    %v1841 = vpack.c.bf16 %v1713, %v1713
    %v1842 = vpack.c.bf16 %v1714, %v1714
    %v1843 = vpack.c.bf16 %v1715, %v1715
    %v1844 = vpack.c.bf16 %v1716, %v1716
    %v1845 = vpack.c.bf16 %v1717, %v1717
    %v1846 = vpack.c.bf16 %v1718, %v1718
    %v1847 = vpack.c.bf16 %v1719, %v1719
    %v1848 = vpack.c.bf16 %v1720, %v1720
    %v1849 = vpack.c.bf16 %v1721, %v1721
    %v1850 = vpack.c.bf16 %v1722, %v1722
    %v1851 = vpack.c.bf16 %v1723, %v1723
    %v1852 = vpack.c.bf16 %v1724, %v1724
    %v1853 = vpack.c.bf16 %v1725, %v1725
    %v1854 = vpack.c.bf16 %v1726, %v1726
    %v1855 = vpack.c.bf16 %v1727, %v1727
    %v1856 = vpack.c.bf16 %v1728, %v1728
    %v1857 = vpack.c.bf16 %v1729, %v1729
    %v1858 = vpack.c.bf16 %v1730, %v1730
    %v1859 = vpack.c.bf16 %v1731, %v1731
    %v1860 = vpack.c.bf16 %v1732, %v1732
    %v1861 = vpack.c.bf16 %v1733, %v1733
    %v1862 = vpack.c.bf16 %v1734, %v1734
    %v1863 = vpack.c.bf16 %v1735, %v1735
    %v1864 = vpack.c.bf16 %v1736, %v1736
    %v1865 = vpack.c.bf16 %v1737, %v1737
    %v1866 = vpack.c.bf16 %v1738, %v1738
    %v1867 = vpack.c.bf16 %v1739, %v1739
    %v1868 = vpack.c.bf16 %v1740, %v1740
    %v1869 = vpack.c.bf16 %v1741, %v1741
    %v1870 = vld [vmem:[#allocation5] sm:$0x3]
    %v1871 = vld [vmem:[%s2] sm:$0x1]
    %v1873 = vperm.slane %v1871, 0
    %v2003 = vunpack.c.l.b16 %v1742
    %v2004 = vunpack.c.l.b16 %v1743
    %v2005 = vunpack.c.l.b16 %v1744
    %v2006 = vunpack.c.l.b16 %v1745
    %v2007 = vunpack.c.l.b16 %v1746
    %v2008 = vunpack.c.l.b16 %v1747
    %v2009 = vunpack.c.l.b16 %v1748
    %v2010 = vunpack.c.l.b16 %v1749
    %v2011 = vunpack.c.l.b16 %v1750
    %v2012 = vunpack.c.l.b16 %v1751
    %v2013 = vunpack.c.l.b16 %v1752
    %v2014 = vunpack.c.l.b16 %v1753
    %v2015 = vunpack.c.l.b16 %v1754
    %v2016 = vunpack.c.l.b16 %v1755
    %v2017 = vunpack.c.l.b16 %v1756
    %v2018 = vunpack.c.l.b16 %v1757
    %v2019 = vunpack.c.l.b16 %v1758
    %v2020 = vunpack.c.l.b16 %v1759
    %v2021 = vunpack.c.l.b16 %v1760
    %v2022 = vunpack.c.l.b16 %v1761
    %v2023 = vunpack.c.l.b16 %v1762
    %v2024 = vunpack.c.l.b16 %v1763
    %v2025 = vunpack.c.l.b16 %v1764
    %v2026 = vunpack.c.l.b16 %v1765
    %v2027 = vunpack.c.l.b16 %v1766
    %v2028 = vunpack.c.l.b16 %v1767
    %v2029 = vunpack.c.l.b16 %v1768
    %v2030 = vunpack.c.l.b16 %v1769
    %v2031 = vunpack.c.l.b16 %v1770
    %v2032 = vunpack.c.l.b16 %v1771
    %v2033 = vunpack.c.l.b16 %v1772
    %v2034 = vunpack.c.l.b16 %v1773
    %v2035 = vunpack.c.l.b16 %v1774
    %v2036 = vunpack.c.l.b16 %v1775
    %v2037 = vunpack.c.l.b16 %v1776
    %v2038 = vunpack.c.l.b16 %v1777
    %v2039 = vunpack.c.l.b16 %v1778
    %v2040 = vunpack.c.l.b16 %v1779
    %v2041 = vunpack.c.l.b16 %v1780
    %v2042 = vunpack.c.l.b16 %v1781
    %v2043 = vunpack.c.l.b16 %v1782
    %v2044 = vunpack.c.l.b16 %v1783
    %v2045 = vunpack.c.l.b16 %v1784
    %v2046 = vunpack.c.l.b16 %v1785
    %v2047 = vunpack.c.l.b16 %v1786
    %v2048 = vunpack.c.l.b16 %v1787
    %v2049 = vunpack.c.l.b16 %v1788
    %v2050 = vunpack.c.l.b16 %v1789
    %v2051 = vunpack.c.l.b16 %v1790
    %v2052 = vunpack.c.l.b16 %v1791
    %v2053 = vunpack.c.l.b16 %v1792
    %v2054 = vunpack.c.l.b16 %v1793
    %v2055 = vunpack.c.l.b16 %v1794
    %v2056 = vunpack.c.l.b16 %v1795
    %v2057 = vunpack.c.l.b16 %v1796
    %v2058 = vunpack.c.l.b16 %v1797
    %v2059 = vunpack.c.l.b16 %v1798
    %v2060 = vunpack.c.l.b16 %v1799
    %v2061 = vunpack.c.l.b16 %v1800
    %v2062 = vunpack.c.l.b16 %v1801
    %v2063 = vunpack.c.l.b16 %v1802
    %v2064 = vunpack.c.l.b16 %v1803
    %v2065 = vunpack.c.l.b16 %v1804
    %v2066 = vunpack.c.l.b16 %v1805
    %v2067 = vunpack.c.l.b16 %v1806
    %v2068 = vunpack.c.l.b16 %v1807
    %v2069 = vunpack.c.l.b16 %v1808
    %v2070 = vunpack.c.l.b16 %v1809
    %v2071 = vunpack.c.l.b16 %v1810
    %v2072 = vunpack.c.l.b16 %v1811
    %v2073 = vunpack.c.l.b16 %v1812
    %v2074 = vunpack.c.l.b16 %v1813
    %v2075 = vunpack.c.l.b16 %v1814
    %v2076 = vunpack.c.l.b16 %v1815
    %v2077 = vunpack.c.l.b16 %v1816
    %v2078 = vunpack.c.l.b16 %v1817
    %v2079 = vunpack.c.l.b16 %v1818
    %v2080 = vunpack.c.l.b16 %v1819
    %v2081 = vunpack.c.l.b16 %v1820
    %v2082 = vunpack.c.l.b16 %v1821
    %v2083 = vunpack.c.l.b16 %v1822
    %v2084 = vunpack.c.l.b16 %v1823
    %v2085 = vunpack.c.l.b16 %v1824
    %v2086 = vunpack.c.l.b16 %v1825
    %v2087 = vunpack.c.l.b16 %v1826
    %v2088 = vunpack.c.l.b16 %v1827
    %v2089 = vunpack.c.l.b16 %v1828
    %v2090 = vunpack.c.l.b16 %v1829
    %v2091 = vunpack.c.l.b16 %v1830
    %v2092 = vunpack.c.l.b16 %v1831
    %v2093 = vunpack.c.l.b16 %v1832
    %v2094 = vunpack.c.l.b16 %v1833
    %v2095 = vunpack.c.l.b16 %v1834
    %v2096 = vunpack.c.l.b16 %v1835
    %v2097 = vunpack.c.l.b16 %v1836
    %v2098 = vunpack.c.l.b16 %v1837
    %v2099 = vunpack.c.l.b16 %v1838
    %v2100 = vunpack.c.l.b16 %v1839
    %v2101 = vunpack.c.l.b16 %v1840
    %v2102 = vunpack.c.l.b16 %v1841
    %v2103 = vunpack.c.l.b16 %v1842
    %v2104 = vunpack.c.l.b16 %v1843
    %v2105 = vunpack.c.l.b16 %v1844
    %v2106 = vunpack.c.l.b16 %v1845
    %v2107 = vunpack.c.l.b16 %v1846
    %v2108 = vunpack.c.l.b16 %v1847
    %v2109 = vunpack.c.l.b16 %v1848
    %v2110 = vunpack.c.l.b16 %v1849
    %v2111 = vunpack.c.l.b16 %v1850
    %v2112 = vunpack.c.l.b16 %v1851
    %v2113 = vunpack.c.l.b16 %v1852
    %v2114 = vunpack.c.l.b16 %v1853
    %v2115 = vunpack.c.l.b16 %v1854
    %v2116 = vunpack.c.l.b16 %v1855
    %v2117 = vunpack.c.l.b16 %v1856
    %v2118 = vunpack.c.l.b16 %v1857
    %v2119 = vunpack.c.l.b16 %v1858
    %v2120 = vunpack.c.l.b16 %v1859
    %v2121 = vunpack.c.l.b16 %v1860
    %v2122 = vunpack.c.l.b16 %v1861
    %v2123 = vunpack.c.l.b16 %v1862
    %v2124 = vunpack.c.l.b16 %v1863
    %v2125 = vunpack.c.l.b16 %v1864
    %v2126 = vunpack.c.l.b16 %v1865
    %v2127 = vunpack.c.l.b16 %v1866
    %v2128 = vunpack.c.l.b16 %v1867
    %v2129 = vunpack.c.l.b16 %v1868
    %v2130 = vunpack.c.l.b16 %v1869
    %v2131 = vlaneseq
    %v2132 = vand.u32 %v2131, 127
    %v2133 = vperm.slane %v2003, %v2132
    %v2134 = vperm.slane %v2004, %v2132
    %v2135 = vperm.slane %v2005, %v2132
    %v2136 = vperm.slane %v2006, %v2132
    %v2137 = vperm.slane %v2007, %v2132
    %v2138 = vperm.slane %v2008, %v2132
    %v2139 = vperm.slane %v2009, %v2132
    %v2140 = vperm.slane %v2010, %v2132
    %v2141 = vperm.slane %v2011, %v2132
    %v2142 = vperm.slane %v2012, %v2132
    %v2143 = vperm.slane %v2013, %v2132
    %v2144 = vperm.slane %v2014, %v2132
    %v2145 = vperm.slane %v2015, %v2132
    %v2146 = vperm.slane %v2016, %v2132
    %v2147 = vperm.slane %v2017, %v2132
    %v2148 = vperm.slane %v2018, %v2132
    %v2149 = vperm.slane %v2019, %v2132
    %v2150 = vperm.slane %v2020, %v2132
    %v2151 = vperm.slane %v2021, %v2132
    %v2152 = vperm.slane %v2022, %v2132
    %v2153 = vperm.slane %v2023, %v2132
    %v2154 = vperm.slane %v2024, %v2132
    %v2155 = vperm.slane %v2025, %v2132
    %v2156 = vperm.slane %v2026, %v2132
    %v2157 = vperm.slane %v2027, %v2132
    %v2158 = vperm.slane %v2028, %v2132
    %v2159 = vperm.slane %v2029, %v2132
    %v2160 = vperm.slane %v2030, %v2132
    %v2161 = vperm.slane %v2031, %v2132
    %v2162 = vperm.slane %v2032, %v2132
    %v2163 = vperm.slane %v2033, %v2132
    %v2164 = vperm.slane %v2034, %v2132
    %v2165 = vperm.slane %v2035, %v2132
    %v2166 = vperm.slane %v2036, %v2132
    %v2167 = vperm.slane %v2037, %v2132
    %v2168 = vperm.slane %v2038, %v2132
    %v2169 = vperm.slane %v2039, %v2132
    %v2170 = vperm.slane %v2040, %v2132
    %v2171 = vperm.slane %v2041, %v2132
    %v2172 = vperm.slane %v2042, %v2132
    %v2173 = vperm.slane %v2043, %v2132
    %v2174 = vperm.slane %v2044, %v2132
    %v2175 = vperm.slane %v2045, %v2132
    %v2176 = vperm.slane %v2046, %v2132
    %v2177 = vperm.slane %v2047, %v2132
    %v2178 = vperm.slane %v2048, %v2132
    %v2179 = vperm.slane %v2049, %v2132
    %v2180 = vperm.slane %v2050, %v2132
    %v2181 = vperm.slane %v2051, %v2132
    %v2182 = vperm.slane %v2052, %v2132
    %v2183 = vperm.slane %v2053, %v2132
    %v2184 = vperm.slane %v2054, %v2132
    %v2185 = vperm.slane %v2055, %v2132
    %v2186 = vperm.slane %v2056, %v2132
    %v2187 = vperm.slane %v2057, %v2132
    %v2188 = vperm.slane %v2058, %v2132
    %v2189 = vperm.slane %v2059, %v2132
    %v2190 = vperm.slane %v2060, %v2132
    %v2191 = vperm.slane %v2061, %v2132
    %v2192 = vperm.slane %v2062, %v2132
    %v2193 = vperm.slane %v2063, %v2132
    %v2194 = vperm.slane %v2064, %v2132
    %v2195 = vperm.slane %v2065, %v2132
    %v2196 = vperm.slane %v2066, %v2132
    %v2197 = vperm.slane %v2067, %v2132
    %v2198 = vperm.slane %v2068, %v2132
    %v2199 = vperm.slane %v2069, %v2132
    %v2200 = vperm.slane %v2070, %v2132
    %v2201 = vperm.slane %v2071, %v2132
    %v2202 = vperm.slane %v2072, %v2132
    %v2203 = vperm.slane %v2073, %v2132
    %v2204 = vperm.slane %v2074, %v2132
    %v2205 = vperm.slane %v2075, %v2132
    %v2206 = vperm.slane %v2076, %v2132
    %v2207 = vperm.slane %v2077, %v2132
    %v2208 = vperm.slane %v2078, %v2132
    %v2209 = vperm.slane %v2079, %v2132
    %v2210 = vperm.slane %v2080, %v2132
    %v2211 = vperm.slane %v2081, %v2132
    %v2212 = vperm.slane %v2082, %v2132
    %v2213 = vperm.slane %v2083, %v2132
    %v2214 = vperm.slane %v2084, %v2132
    %v2215 = vperm.slane %v2085, %v2132
    %v2216 = vperm.slane %v2086, %v2132
    %v2217 = vperm.slane %v2087, %v2132
    %v2218 = vperm.slane %v2088, %v2132
    %v2219 = vperm.slane %v2089, %v2132
    %v2220 = vperm.slane %v2090, %v2132
    %v2221 = vperm.slane %v2091, %v2132
    %v2222 = vperm.slane %v2092, %v2132
    %v2223 = vperm.slane %v2093, %v2132
    %v2224 = vperm.slane %v2094, %v2132
    %v2225 = vperm.slane %v2095, %v2132
    %v2226 = vperm.slane %v2096, %v2132
    %v2227 = vperm.slane %v2097, %v2132
    %v2228 = vperm.slane %v2098, %v2132
    %v2229 = vperm.slane %v2099, %v2132
    %v2230 = vperm.slane %v2100, %v2132
    %v2231 = vperm.slane %v2101, %v2132
    %v2232 = vperm.slane %v2102, %v2132
    %v2233 = vperm.slane %v2103, %v2132
    %v2234 = vperm.slane %v2104, %v2132
    %v2235 = vperm.slane %v2105, %v2132
    %v2236 = vperm.slane %v2106, %v2132
    %v2237 = vperm.slane %v2107, %v2132
    %v2238 = vperm.slane %v2108, %v2132
    %v2239 = vperm.slane %v2109, %v2132
    %v2240 = vperm.slane %v2110, %v2132
    %v2241 = vperm.slane %v2111, %v2132
    %v2242 = vperm.slane %v2112, %v2132
    %v2243 = vperm.slane %v2113, %v2132
    %v2244 = vperm.slane %v2114, %v2132
    %v2245 = vperm.slane %v2115, %v2132
    %v2246 = vperm.slane %v2116, %v2132
    %v2247 = vperm.slane %v2117, %v2132
    %v2248 = vperm.slane %v2118, %v2132
    %v2249 = vperm.slane %v2119, %v2132
    %v2250 = vperm.slane %v2120, %v2132
    %v2251 = vperm.slane %v2121, %v2132
    %v2252 = vperm.slane %v2122, %v2132
    %v2253 = vperm.slane %v2123, %v2132
    %v2254 = vperm.slane %v2124, %v2132
    %v2255 = vperm.slane %v2125, %v2132
    %v2256 = vperm.slane %v2126, %v2132
    %v2257 = vperm.slane %v2127, %v2132
    %v2258 = vperm.slane %v2128, %v2132
    %v2259 = vperm.slane %v2129, %v2132
    %v2260 = vperm.slane %v2130, %v2132
    %vm2261 = vcmask 1041409
    %v2262 = vsel %vm2261, %v2134, %v2133
    %vm2263 = vcmask 1042434
    %v2264 = vsel %vm2263, %v2135, %v2262
    %vm2265 = vcmask 1043459
    %v2266 = vsel %vm2265, %v2136, %v2264
    %vm2267 = vcmask 1044484
    %v2268 = vsel %vm2267, %v2137, %v2266
    %vm2269 = vcmask 1045509
    %v2270 = vsel %vm2269, %v2138, %v2268
    %vm2271 = vcmask 1046534
    %v2272 = vsel %vm2271, %v2139, %v2270
    %vm2273 = vcmask 1047559
    %v2274 = vsel %vm2273, %v2140, %v2272
    %v2275 = vsel %vm2261, %v2142, %v2141
    %v2276 = vsel %vm2263, %v2143, %v2275
    %v2277 = vsel %vm2265, %v2144, %v2276
    %v2278 = vsel %vm2267, %v2145, %v2277
    %v2279 = vsel %vm2269, %v2146, %v2278
    %v2280 = vsel %vm2271, %v2147, %v2279
    %v2281 = vsel %vm2273, %v2148, %v2280
    %v2282 = vsel %vm2261, %v2150, %v2149
    %v2283 = vsel %vm2263, %v2151, %v2282
    %v2284 = vsel %vm2265, %v2152, %v2283
    %v2285 = vsel %vm2267, %v2153, %v2284
    %v2286 = vsel %vm2269, %v2154, %v2285
    %v2287 = vsel %vm2271, %v2155, %v2286
    %v2288 = vsel %vm2273, %v2156, %v2287
    %v2289 = vsel %vm2261, %v2158, %v2157
    %v2290 = vsel %vm2263, %v2159, %v2289
    %v2291 = vsel %vm2265, %v2160, %v2290
    %v2292 = vsel %vm2267, %v2161, %v2291
    %v2293 = vsel %vm2269, %v2162, %v2292
    %v2294 = vsel %vm2271, %v2163, %v2293
    %v2295 = vsel %vm2273, %v2164, %v2294
    %v2296 = vsel %vm2261, %v2166, %v2165
    %v2297 = vsel %vm2263, %v2167, %v2296
    %v2298 = vsel %vm2265, %v2168, %v2297
    %v2299 = vsel %vm2267, %v2169, %v2298
    %v2300 = vsel %vm2269, %v2170, %v2299
    %v2301 = vsel %vm2271, %v2171, %v2300
    %v2302 = vsel %vm2273, %v2172, %v2301
    %v2303 = vsel %vm2261, %v2174, %v2173
    %v2304 = vsel %vm2263, %v2175, %v2303
    %v2305 = vsel %vm2265, %v2176, %v2304
    %v2306 = vsel %vm2267, %v2177, %v2305
    %v2307 = vsel %vm2269, %v2178, %v2306
    %v2308 = vsel %vm2271, %v2179, %v2307
    %v2309 = vsel %vm2273, %v2180, %v2308
    %v2310 = vsel %vm2261, %v2182, %v2181
    %v2311 = vsel %vm2263, %v2183, %v2310
    %v2312 = vsel %vm2265, %v2184, %v2311
    %v2313 = vsel %vm2267, %v2185, %v2312
    %v2314 = vsel %vm2269, %v2186, %v2313
    %v2315 = vsel %vm2271, %v2187, %v2314
    %v2316 = vsel %vm2273, %v2188, %v2315
    %v2317 = vsel %vm2261, %v2190, %v2189
    %v2318 = vsel %vm2263, %v2191, %v2317
    %v2319 = vsel %vm2265, %v2192, %v2318
    %v2320 = vsel %vm2267, %v2193, %v2319
    %v2321 = vsel %vm2269, %v2194, %v2320
    %v2322 = vsel %vm2271, %v2195, %v2321
    %v2323 = vsel %vm2273, %v2196, %v2322
    %v2324 = vsel %vm2261, %v2198, %v2197
    %v2325 = vsel %vm2263, %v2199, %v2324
    %v2326 = vsel %vm2265, %v2200, %v2325
    %v2327 = vsel %vm2267, %v2201, %v2326
    %v2328 = vsel %vm2269, %v2202, %v2327
    %v2329 = vsel %vm2271, %v2203, %v2328
    %v2330 = vsel %vm2273, %v2204, %v2329
    %v2331 = vsel %vm2261, %v2206, %v2205
    %v2332 = vsel %vm2263, %v2207, %v2331
    %v2333 = vsel %vm2265, %v2208, %v2332
    %v2334 = vsel %vm2267, %v2209, %v2333
    %v2335 = vsel %vm2269, %v2210, %v2334
    %v2336 = vsel %vm2271, %v2211, %v2335
    %v2337 = vsel %vm2273, %v2212, %v2336
    %v2338 = vsel %vm2261, %v2214, %v2213
    %v2339 = vsel %vm2263, %v2215, %v2338
    %v2340 = vsel %vm2265, %v2216, %v2339
    %v2341 = vsel %vm2267, %v2217, %v2340
    %v2342 = vsel %vm2269, %v2218, %v2341
    %v2343 = vsel %vm2271, %v2219, %v2342
    %v2344 = vsel %vm2273, %v2220, %v2343
    %v2345 = vsel %vm2261, %v2222, %v2221
    %v2346 = vsel %vm2263, %v2223, %v2345
    %v2347 = vsel %vm2265, %v2224, %v2346
    %v2348 = vsel %vm2267, %v2225, %v2347
    %v2349 = vsel %vm2269, %v2226, %v2348
    %v2350 = vsel %vm2271, %v2227, %v2349
    %v2351 = vsel %vm2273, %v2228, %v2350
    %v2352 = vsel %vm2261, %v2230, %v2229
    %v2353 = vsel %vm2263, %v2231, %v2352
    %v2354 = vsel %vm2265, %v2232, %v2353
    %v2355 = vsel %vm2267, %v2233, %v2354
    %v2356 = vsel %vm2269, %v2234, %v2355
    %v2357 = vsel %vm2271, %v2235, %v2356
    %v2358 = vsel %vm2273, %v2236, %v2357
    %v2359 = vsel %vm2261, %v2238, %v2237
    %v2360 = vsel %vm2263, %v2239, %v2359
    %v2361 = vsel %vm2265, %v2240, %v2360
    %v2362 = vsel %vm2267, %v2241, %v2361
    %v2363 = vsel %vm2269, %v2242, %v2362
    %v2364 = vsel %vm2271, %v2243, %v2363
    %v2365 = vsel %vm2273, %v2244, %v2364
    %v2366 = vsel %vm2261, %v2246, %v2245
    %v2367 = vsel %vm2263, %v2247, %v2366
    %v2368 = vsel %vm2265, %v2248, %v2367
    %v2369 = vsel %vm2267, %v2249, %v2368
    %v2370 = vsel %vm2269, %v2250, %v2369
    %v2371 = vsel %vm2271, %v2251, %v2370
    %v2372 = vsel %vm2273, %v2252, %v2371
    %v2373 = vsel %vm2261, %v2254, %v2253
    %v2374 = vsel %vm2263, %v2255, %v2373
    %v2375 = vsel %vm2265, %v2256, %v2374
    %v2376 = vsel %vm2267, %v2257, %v2375
    %v2377 = vsel %vm2269, %v2258, %v2376
    %v2378 = vsel %vm2271, %v2259, %v2377
    %v2379 = vsel %vm2273, %v2260, %v2378
    %v2380 = vpack.c.b16 %v2281, %v2274
    %v2381 = vpack.c.b16 %v2295, %v2288
    %v2382 = vpack.c.b16 %v2309, %v2302
    %v2383 = vpack.c.b16 %v2323, %v2316
    %v2384 = vpack.c.b16 %v2337, %v2330
    %v2385 = vpack.c.b16 %v2351, %v2344
    %v2386 = vpack.c.b16 %v2365, %v2358
    %v2387 = vpack.c.b16 %v2379, %v2372
    %vm2388 = vcmask 31744
    %v2390 = vsel %vm2388, %v2380, 0
    %v2393 = vsel %vm2388, %v2381, 0
    %v2396 = vsel %vm2388, %v2382, 0
    %v2399 = vsel %vm2388, %v2383, 0
    %v2402 = vsel %vm2388, %v2384, 0
    %v2405 = vsel %vm2388, %v2385, 0
    %v2408 = vsel %vm2388, %v2386, 0
    %v2411 = vsel %vm2388, %v2387, 0
    %vm2413 = vcmask 1041408
    %v2415 = vsel %vm2413, %v1870, 0
    %2417 = vmatpush.bf16.msra.mxu0 0
    %2418 = vmatpush.bf16.msra.mxu0 0
    %2419 = vmatpush.bf16.msra.mxu0 0
    %2420 = vmatpush.bf16.msra.mxu0 0
    %2421 = vmatpush.bf16.msra.mxu0 0
    %2422 = vmatpush.bf16.msra.mxu0 0
    %2423 = vmatpush.bf16.msra.mxu0 0
    %2424 = vmatpush.bf16.msra.mxu0 %v2415
    %2425 = vmatmul.bf16.gmra.mxu0 %v2390
    %v2426 = vpop.f32.mrf.mxu0
    %v2427 = vadd.f32 %v1873, %v2426
    %v2428 = vpop.f32.mrf.mxu0
    %v2429 = vadd.f32 %v1873, %v2428
    %2430 = vmatmul.bf16.gmra.mxu0 %v2393
    %v2431 = vpop.f32.mrf.mxu0
    %v2432 = vadd.f32 %v1873, %v2431
    %v2433 = vpop.f32.mrf.mxu0
    %v2434 = vadd.f32 %v1873, %v2433
    %2435 = vmatmul.bf16.gmra.mxu0 %v2396
    %v2436 = vpop.f32.mrf.mxu0
    %v2437 = vadd.f32 %v1873, %v2436
    %v2438 = vpop.f32.mrf.mxu0
    %v2439 = vadd.f32 %v1873, %v2438
    %2440 = vmatmul.bf16.gmra.mxu0 %v2399
    %v2441 = vpop.f32.mrf.mxu0
    %v2442 = vadd.f32 %v1873, %v2441
    %v2443 = vpop.f32.mrf.mxu0
    %v2444 = vadd.f32 %v1873, %v2443
    %2445 = vmatmul.bf16.gmra.mxu0 %v2402
    %v2446 = vpop.f32.mrf.mxu0
    %v2447 = vadd.f32 %v1873, %v2446
    %v2448 = vpop.f32.mrf.mxu0
    %v2449 = vadd.f32 %v1873, %v2448
    %2450 = vmatmul.bf16.gmra.mxu0 %v2405
    %v2451 = vpop.f32.mrf.mxu0
    %v2452 = vadd.f32 %v1873, %v2451
    %v2453 = vpop.f32.mrf.mxu0
    %v2454 = vadd.f32 %v1873, %v2453
    %2455 = vmatmul.bf16.gmra.mxu0 %v2408
    %v2456 = vpop.f32.mrf.mxu0
    %v2457 = vadd.f32 %v1873, %v2456
    %v2458 = vpop.f32.mrf.mxu0
    %v2459 = vadd.f32 %v1873, %v2458
    %2460 = vmatmul.bf16.gmra.mxu0 %v2411
    %v2461 = vpop.f32.mrf.mxu0
    %v2462 = vadd.f32 %v1873, %v2461
    %v2463 = vpop.f32.mrf.mxu0
    %v2464 = vadd.f32 %v1873, %v2463
    %2465 = vdwg.mxu0
    %v2466 = vmax.f32 %v2427, 0.0
    %v2467 = vmax.f32 %v2429, 0.0
    %v2468 = vmax.f32 %v2432, 0.0
    %v2469 = vmax.f32 %v2434, 0.0
    %v2470 = vmax.f32 %v2437, 0.0
    %v2471 = vmax.f32 %v2439, 0.0
    %v2472 = vmax.f32 %v2442, 0.0
    %v2473 = vmax.f32 %v2444, 0.0
    %v2474 = vmax.f32 %v2447, 0.0
    %v2475 = vmax.f32 %v2449, 0.0
    %v2476 = vmax.f32 %v2452, 0.0
    %v2477 = vmax.f32 %v2454, 0.0
    %v2478 = vmax.f32 %v2457, 0.0
    %v2479 = vmax.f32 %v2459, 0.0
    %v2480 = vmax.f32 %v2462, 0.0
    %v2481 = vmax.f32 %v2464, 0.0
    %v2482 = vpack.c.bf16 %v2467, %v2466
    %v2483 = vpack.c.bf16 %v2469, %v2468
    %v2484 = vpack.c.bf16 %v2471, %v2470
    %v2485 = vpack.c.bf16 %v2473, %v2472
    %v2486 = vpack.c.bf16 %v2475, %v2474
    %v2487 = vpack.c.bf16 %v2477, %v2476
    %v2488 = vpack.c.bf16 %v2479, %v2478
    %v2489 = vpack.c.bf16 %v2481, %v2480
    %v2490 = vld [vmem:[#allocation7] sm:$0xf]
    %v2491 = vld [vmem:[#allocation7 + $0x4] sm:$0xf]
    %v2492 = vld [vmem:[#allocation7 + $0x8] sm:$0xf]
    %v2493 = vld [vmem:[#allocation7 + $0xc] sm:$0xf]
    %v2494 = vld [vmem:[#allocation7 + $0x10] sm:$0xf]
    %v2495 = vld [vmem:[#allocation7 + $0x14] sm:$0xf]
    %v2496 = vld [vmem:[#allocation7 + $0x18] sm:$0xf]
    %v2497 = vld [vmem:[#allocation7 + $0x1c] sm:$0xf]
    %v2498 = vld [vmem:[#allocation7 + $0x20] sm:$0xf]
    %v2499 = vld [vmem:[#allocation7 + $0x24] sm:$0xf]
    %v2500 = vld [vmem:[#allocation7 + $0x28] sm:$0xf]
    %v2501 = vld [vmem:[#allocation7 + $0x2c] sm:$0xf]
    %v2502 = vld [vmem:[#allocation7 + $0x30] sm:$0xf]
    %v2503 = vld [vmem:[#allocation7 + $0x34] sm:$0xf]
    %v2504 = vld [vmem:[#allocation7 + $0x38] sm:$0xf]
    %v2505 = vld [vmem:[#allocation7 + $0x3c] sm:$0xf]
    %v2506 = vld [vmem:[%s4] sm:$0x1]
    %v2508 = vperm.slane %v2506, 0
    %v2526 = vunpack.c.l.b16 %v2490
    %v2527 = vunpack.c.l.b16 %v2491
    %v2528 = vunpack.c.l.b16 %v2492
    %v2529 = vunpack.c.l.b16 %v2493
    %v2530 = vunpack.c.l.b16 %v2494
    %v2531 = vunpack.c.l.b16 %v2495
    %v2532 = vunpack.c.l.b16 %v2496
    %v2533 = vunpack.c.l.b16 %v2497
    %v2534 = vunpack.c.l.b16 %v2498
    %v2535 = vunpack.c.l.b16 %v2499
    %v2536 = vunpack.c.l.b16 %v2500
    %v2537 = vunpack.c.l.b16 %v2501
    %v2538 = vunpack.c.l.b16 %v2502
    %v2539 = vunpack.c.l.b16 %v2503
    %v2540 = vunpack.c.l.b16 %v2504
    %v2541 = vunpack.c.l.b16 %v2505
    %v2542 = vpack.c.b16 %v2527, %v2526
    %v2543 = vpack.c.b16 %v2529, %v2528
    %v2544 = vpack.c.b16 %v2531, %v2530
    %v2545 = vpack.c.b16 %v2533, %v2532
    %v2546 = vpack.c.b16 %v2535, %v2534
    %v2547 = vpack.c.b16 %v2537, %v2536
    %v2548 = vpack.c.b16 %v2539, %v2538
    %v2549 = vpack.c.b16 %v2541, %v2540
    %2558 = vmatpush.bf16.msra.mxu0 %v2549
    %2559 = vmatpush.bf16.msra.mxu0 %v2548
    %2560 = vmatpush.bf16.msra.mxu0 %v2547
    %2561 = vmatpush.bf16.msra.mxu0 %v2546
    %2562 = vmatpush.bf16.msra.mxu0 %v2545
    %2563 = vmatpush.bf16.msra.mxu0 %v2544
    %2564 = vmatpush.bf16.msra.mxu0 %v2543
    %2565 = vmatpush.bf16.msra.mxu0 %v2542
    %2566 = vmatmul.bf16.gmra.mxu0 %v2482
    %v2567 = vpop.f32.mrf.mxu0
    %v2568 = vadd.f32 %v2508, %v2567
    %v2569 = vpop.f32.mrf.mxu0
    %v2570 = vadd.f32 %v2508, %v2569
    %2571 = vmatmul.bf16.gmra.mxu0 %v2483
    %v2572 = vpop.f32.mrf.mxu0
    %v2573 = vadd.f32 %v2508, %v2572
    %v2574 = vpop.f32.mrf.mxu0
    %v2575 = vadd.f32 %v2508, %v2574
    %2576 = vmatmul.bf16.gmra.mxu0 %v2484
    %v2577 = vpop.f32.mrf.mxu0
    %v2578 = vadd.f32 %v2508, %v2577
    %v2579 = vpop.f32.mrf.mxu0
    %v2580 = vadd.f32 %v2508, %v2579
    %2581 = vmatmul.bf16.gmra.mxu0 %v2485
    %v2582 = vpop.f32.mrf.mxu0
    %v2583 = vadd.f32 %v2508, %v2582
    %v2584 = vpop.f32.mrf.mxu0
    %v2585 = vadd.f32 %v2508, %v2584
    %2586 = vmatmul.bf16.gmra.mxu0 %v2486
    %v2587 = vpop.f32.mrf.mxu0
    %v2588 = vadd.f32 %v2508, %v2587
    %v2589 = vpop.f32.mrf.mxu0
    %v2590 = vadd.f32 %v2508, %v2589
    %2591 = vmatmul.bf16.gmra.mxu0 %v2487
    %v2592 = vpop.f32.mrf.mxu0
    %v2593 = vadd.f32 %v2508, %v2592
    %v2594 = vpop.f32.mrf.mxu0
    %v2595 = vadd.f32 %v2508, %v2594
    %2596 = vmatmul.bf16.gmra.mxu0 %v2488
    %v2597 = vpop.f32.mrf.mxu0
    %v2598 = vadd.f32 %v2508, %v2597
    %v2599 = vpop.f32.mrf.mxu0
    %v2600 = vadd.f32 %v2508, %v2599
    %2601 = vmatmul.bf16.gmra.mxu0 %v2489
    %v2602 = vpop.f32.mrf.mxu0
    %v2603 = vadd.f32 %v2508, %v2602
    %v2604 = vpop.f32.mrf.mxu0
    %v2605 = vadd.f32 %v2508, %v2604
    %2606 = vdwg.mxu0
    %2607 = vst [vmem:[#allocation8] sm:$0xff] %v2568
    %2608 = vst [vmem:[#allocation8 + $0x8] sm:$0xff] %v2570
    %2609 = vst [vmem:[#allocation8 + $0x10] sm:$0xff] %v2573
    %2610 = vst [vmem:[#allocation8 + $0x18] sm:$0xff] %v2575
    %2611 = vst [vmem:[#allocation8 + $0x20] sm:$0xff] %v2578
    %2612 = vst [vmem:[#allocation8 + $0x28] sm:$0xff] %v2580
    %2613 = vst [vmem:[#allocation8 + $0x30] sm:$0xff] %v2583
    %2614 = vst [vmem:[#allocation8 + $0x38] sm:$0xff] %v2585
    %2615 = vst [vmem:[#allocation8 + $0x40] sm:$0xff] %v2588
    %2616 = vst [vmem:[#allocation8 + $0x48] sm:$0xff] %v2590
    %2617 = vst [vmem:[#allocation8 + $0x50] sm:$0xff] %v2593
    %2618 = vst [vmem:[#allocation8 + $0x58] sm:$0xff] %v2595
    %2619 = vst [vmem:[#allocation8 + $0x60] sm:$0xff] %v2598
    %2620 = vst [vmem:[#allocation8 + $0x68] sm:$0xff] %v2600
    %2621 = vst [vmem:[#allocation8 + $0x70] sm:$0xff] %v2603
    %2622 = vst [vmem:[#allocation8 + $0x78] sm:$0xff] %v2605
    // Predicated region
    $region34: #{tpu_custom_call.1} parent=1 // pred_check
      _
    $region35: #{tpu_custom_call.1} parent=1 // pred_check_branch
      %2624 = sbr.rel (0) target = $region37
    $region36: #{tpu_custom_call.1} parent=1 // pred_region
      %2626 = vsyncadd [#allocation4], 0
      %s2627 = sshll.u32 [#allocation8], 4
      %s2628 = int_to_ptr.vmem [resolvable:$true] %s2627
      %s2629 = sshll.u32 %s5, 4
      %s2630 = int_to_ptr.hbm [resolvable:$true] %s2629
      %2635 = dma.vmem_to_hbm [thread:$0]  %s2628, 2048, %s2630, [#allocation4], 128, 128, 8
    $region37: #{tpu_custom_call.1} parent=1 // pred_fallthru
      _
    // Predicated region
    $region38: #{tpu_custom_call.1} parent=1 // pred_check
      _
    $region39: #{tpu_custom_call.1} parent=1 // pred_check_branch
      %2637 = sbr.rel (0) target = $region41
    $region40: #{tpu_custom_call.1} parent=1 // pred_region
      %2639 = dma.done [#allocation4], 2048
    $region41: #{tpu_custom_call.1} parent=1 // pred_fallthru
      _
    %2640 = vsyncpa [#allocation3], 1
    %2641 = vsyncpa [#allocation6], 1
    %2642 = vsyncpa [#allocation4], 1

</llo_original>
